<compile_context>
chip_gen: v7x
topology: tpu7x:2x2x1
jax: 0.10.0
libtpu: 0.0.40
codegen_flags: <defaults>
</compile_context>

<pallas_src>
import functools
import math

import numpy as np
import jax
import jax.numpy as jnp
from jax import lax
from jax.experimental import pallas as pl
from jax.experimental.pallas import tpu as pltpu


# ----------------------------------------------------------------------------
# Buffer construction (host-side "glue": reproduces the module's __init__ math)
# ----------------------------------------------------------------------------
def get_gamma_depth(depth, alpha_max_depth, max_depth):
    exponent = 2 * depth / max_depth
    return -(1.0 / 2.0) * math.log(1.0 - alpha_max_depth ** exponent)


def get_kernel_matrix(dim, gamma_depth, dtype=np.float64):
    _arange = np.arange(dim, dtype=dtype)
    diff = np.abs(_arange[:, None] - _arange[None, :])
    return np.exp(-gamma_depth * diff)


def sqrtpd(A, inverse=False):
    """(Inverse) square root of a symmetric positive definite matrix (numpy/float64)."""
    eigvals, eigvecs = np.linalg.eigh(A)
    threshold = eigvals.max(-1) * eigvals.shape[-1] * np.finfo(eigvals.dtype).eps
    clamped = np.maximum(eigvals, threshold)
    sqrt_eigvals = (1.0 / np.sqrt(clamped)) if inverse else np.sqrt(clamped)
    return (eigvecs * sqrt_eigvals[None, :]) @ eigvecs.T


def get_decomposed_kernel_matrix(dim, depth, alpha_max_depth, max_depth, inverse):
    if depth == 0:
        return np.eye(dim, dtype=np.float32)
    gamma_depth = get_gamma_depth(depth, alpha_max_depth, max_depth)
    kernel_matrix = get_kernel_matrix(dim, gamma_depth, dtype=np.float64)
    return sqrtpd(kernel_matrix, inverse).astype(np.float32)


def decompose_attention(A):
    assert (A > 0).sum() == math.prod(A.shape)
    row_sum = A.sum(1)                      # shape (N,)
    B = np.log(A / row_sum)                 # trailing-dim broadcast (torch semantics)
    return row_sum, B


def build_attention_buffers(seq_length, depth, max_depth, alpha_max_depth):
    previous_inv = get_decomposed_kernel_matrix(
        seq_length, depth - 1, alpha_max_depth, max_depth, inverse=True)
    current = get_decomposed_kernel_matrix(
        seq_length, depth, alpha_max_depth, max_depth, inverse=False)
    attention = current @ previous_inv
    min_value = attention.min()
    if min_value <= 0:
        attention = np.maximum(attention, abs(min_value) + np.finfo(attention.dtype).eps)
    d, Bmat = decompose_attention(attention)
    return d.astype(np.float32), Bmat.astype(np.float32)


# ----------------------------------------------------------------------------
# Tiling heuristics
# ----------------------------------------------------------------------------
def _pick_head_group(heads, dim_head):
    """Smallest divisor G of `heads` with G*dim_head a multiple of 128 lanes;
    if none exists (small models, D < 128), process all heads in one group."""
    for g in range(1, heads + 1):
        if heads % g == 0 and (g * dim_head) % 128 == 0:
            return g
    return heads


def _pick_batch_tile(batch, n, d_model, gw, budget_bytes=8 << 20):
    """Largest divisor TB of `batch` whose per-step working set stays under a
    conservative VMEM budget, preferring the smallest TB with TB*N >= 256 rows."""
    best = 1
    for tb in range(1, batch + 1):
        if batch % tb:
            continue
        m = tb * n
        step_bytes = (m * d_model * 2          # x block (bf16)
                      + m * 3 * gw * 6         # qkv f32 accumulation + bf16 copy
                      + 2 * m * n * 4          # one head's scores + exp (f32)
                      + 2 * m * gw * 4)        # scratch + output block
        if step_bytes > budget_bytes:
            break
        best = tb
        if m >= 256:
            break
    return best


# ----------------------------------------------------------------------------
# Pallas kernel: fused wide QKV projection + biased softmax attention per head
# ----------------------------------------------------------------------------
def _attn_kernel(x_ref, w_ref, b_ref, bias_ref, d_ref, o_ref, acc_ref, *,
                 group, dim_head):
    tb, n, d_model = x_ref.shape
    gw = group * dim_head

    # One wide MXU matmul for this head-group's q|k|v over all TB*N rows,
    # f32 accumulation + fused bias, then a SINGLE downcast to bf16 (both
    # downstream matmuls consume bf16).  The SDPA scale is already folded
    # into the q columns of W/b on the host.
    x2 = x_ref[...].reshape(tb * n, d_model)                       # (M, D) bf16
    qkv = (jnp.dot(x2, w_ref[...], preferred_element_type=jnp.float32)
           + b_ref[...]).astype(jnp.bfloat16)                      # (M, 3*gw) bf16
    qkv = qkv.reshape(tb, n, 3 * gw)                               # (TB, N, 3*gw)

    bias = bias_ref[...]                                           # (N, N) f32
    d_scale = d_ref[...]                                           # (N, 1) f32

    for h in range(group):                                         # static, unrolled
        lo = h * dim_head
        q = qkv[:, :, lo:lo + dim_head]                            # (TB, N, dh) bf16
        k = qkv[:, :, gw + lo:gw + lo + dim_head]
        v = qkv[:, :, 2 * gw + lo:2 * gw + lo + dim_head]

        # QK^T batched over TB, contracting the last dims (no explicit transpose).
        s = lax.dot_general(q, k, (((2,), (2,)), ((0,), (0,))),
                            preferred_element_type=jnp.float32) + bias   # (TB, N, N)

        # Numerically stable softmax with deferred normalization (f32 path:
        # safe on v5e; v6e/v7x could do the exp in bf16 with an f32 row-sum).
        m = jnp.max(s, axis=-1, keepdims=True)
        e = jnp.exp(s - m)                                         # f32 (EUP)
        rowsum = jnp.sum(e, axis=-1, keepdims=True)                # (TB, N, 1) f32

        pv = lax.dot_general(e.astype(jnp.bfloat16), v,
                             (((2,), (1,)), ((0,), (0,))),
                             preferred_element_type=jnp.float32)   # (TB, N, dh)

        # One (TB, N, 1) multiply (d * 1/rowsum) instead of an N*N divide pass.
        # Write this head into the VMEM scratch so its f32 output does not stay
        # live across the rest of the unrolled head loop.
        acc_ref[:, :, lo:lo + dim_head] = (
            d_scale * pl.reciprocal(rowsum, approx=True)) * pv

    # Single lane-dense cast + store of the whole (TB, N, gw) head-group block.
    o_ref[...] = acc_ref[...].astype(o_ref.dtype)


def attention_forward_pallas(x, W, b, bias_B, d_vec, heads,
                             *, vmem_limit_bytes=32 * 1024 * 1024):
    """x: (B, N, D) f32; W: (D, 3D); b: (3D,); bias_B: (N, N); d_vec: (N,)."""
    Bsz, N, D = x.shape
    assert D % heads == 0
    dim_head = D // heads
    scale = dim_head ** (-0.5)        # SDPA default scale = 1/sqrt(head_dim)

    group = _pick_head_group(heads, dim_head)      # heads handled per grid step
    gw = group * dim_head                          # output lane width per step
    n_groups = heads // group
    TB = _pick_batch_tile(Bsz, N, D, gw)
    n_batch_tiles = Bsz // TB

    # Host-side parameter prep:
    #  * fold the SDPA scale into the q projection (exact, in f32),
    #  * permute the QKV columns into head-group-major order [q_g | k_g | v_g]
    #    so each grid step reads one contiguous (128-aligned when n_groups > 1)
    #    column slab of W/b and writes one contiguous (TB, N, gw) output slab.
    Wq, Wk, Wv = W[:, :D] * scale, W[:, D:2 * D], W[:, 2 * D:]
    bq, bk, bv = b[:D] * scale, b[D:2 * D], b[2 * D:]
    w_cols, b_cols = [], []
    for g in range(n_groups):
        sl = slice(g * gw, (g + 1) * gw)
        w_cols += [Wq[:, sl], Wk[:, sl], Wv[:, sl]]
        b_cols += [bq[sl], bk[sl], bv[sl]]
    W_grouped = jnp.concatenate(w_cols, axis=1).astype(jnp.bfloat16)    # (D, 3D)
    b_grouped = jnp.concatenate(b_cols).reshape(1, 3 * D).astype(jnp.float32)

    x_bf = x.astype(jnp.bfloat16)
    bias_f32 = bias_B.astype(jnp.float32)
    d2 = d_vec.reshape(N, 1).astype(jnp.float32)

    kernel = functools.partial(_attn_kernel, group=group, dim_head=dim_head)

    def run(single_buffer_constants):
        # Grid-constant operands don't need the default double-buffering;
        # Buffered(1) halves their resident VMEM footprint.
        const_kw = dict(pipeline_mode=pl.Buffered(1)) if single_buffer_constants else {}
        wb_kw = const_kw if n_groups == 1 else {}   # W/b vary along the group axis

        grid_spec = pltpu.PrefetchScalarGridSpec(
            num_scalar_prefetch=0,
            grid=(n_batch_tiles, n_groups),
            in_specs=[
                pl.BlockSpec((TB, N, D), lambda bi, gi: (bi, 0, 0)),          # x
                pl.BlockSpec((D, 3 * gw), lambda bi, gi: (0, gi), **wb_kw),   # grouped W
                pl.BlockSpec((1, 3 * gw), lambda bi, gi: (0, gi), **wb_kw),   # grouped bias
                pl.BlockSpec((N, N), lambda bi, gi: (0, 0), **const_kw),      # additive B
                pl.BlockSpec((N, 1), lambda bi, gi: (0, 0), **const_kw),      # d row scale
            ],
            out_specs=pl.BlockSpec((TB, N, gw), lambda bi, gi: (bi, 0, gi)),
            scratch_shapes=[pltpu.VMEM((TB, N, gw), jnp.float32)],
        )
        return pl.pallas_call(
            kernel,
            out_shape=jax.ShapeDtypeStruct((Bsz, N, D), x.dtype),
            grid_spec=grid_spec,
            compiler_params=pltpu.CompilerParams(
                dimension_semantics=("parallel", "parallel"),
                vmem_limit_bytes=vmem_limit_bytes),
        )(x_bf, W_grouped, b_grouped, bias_f32, d2)

    try:
        return run(single_buffer_constants=True)
    except Exception:
        # pl.Buffered(1) / pipeline_mode not supported on this jax version:
        # fall back to default buffering for the grid-constant operands.
        return run(single_buffer_constants=False)


# ----------------------------------------------------------------------------
# Pure-JAX f32 reference (mirrors the PyTorch forward) for a sanity check
# ----------------------------------------------------------------------------
def attention_forward_ref(x, W, b, bias_B, d_vec, heads):
    Bsz, N, D = x.shape
    dim_head = D // heads
    scale = dim_head ** (-0.5)
    qkv = x @ W + b
    qkv = qkv.reshape(Bsz, N, 3, heads, dim_head).transpose(2, 0, 3, 1, 4)
    q, k, v = qkv[0], qkv[1], qkv[2]
    s = jnp.einsum('bhnd,bhmd->bhnm', q, k) * scale + bias_B[None, None]
    p = jax.nn.softmax(s, axis=-1)
    out = d_vec.reshape(1, 1, N, 1) * jnp.einsum('bhnm,bhmd->bhnd', p, v)
    return out.transpose(0, 2, 1, 3).reshape(Bsz, N, D)


if __name__ == "__main__":
    # Module hyper-parameters (small but consistent with the module).
    batch = 2
    seq_length = 8
    dim = 32
    heads = 4
    depth = 1
    max_depth = 4
    alpha_max_depth = 0.5

    d_np, B_np = build_attention_buffers(seq_length, depth, max_depth, alpha_max_depth)
    d_vec = jnp.asarray(d_np)                   # (N,)
    bias_B = jnp.asarray(B_np)                  # (N, N)

    key = jax.random.PRNGKey(0)
    k_w, k_x, k_w2, k_b2 = jax.random.split(key, 4)

    x = jax.random.normal(k_x, (batch, seq_length, dim), jnp.float32)

    # --- Test 1: parameters mirroring the module's __init__ ------------------
    #   to_qkv weight (torch layout (3*dim, dim)): rows [:dim] zero, rows [dim:]
    #   ~ N(0, dim^-0.5); bias = 0.  JAX weight is W = W_torch.T, shape (dim, 3*dim).
    W_torch = jnp.concatenate([
        jnp.zeros((dim, dim), jnp.float32),
        jax.random.normal(k_w, (2 * dim, dim), jnp.float32) * (dim ** -0.5),
    ], axis=0)
    W1 = W_torch.T
    b1 = jnp.zeros((3 * dim,), jnp.float32)

    out1 = jax.block_until_ready(attention_forward_pallas(x, W1, b1, bias_B, d_vec, heads))
    ref1 = attention_forward_ref(x, W1, b1, bias_B, d_vec, heads)
    # bf16 matmul operands -> looser tolerance than pure-f32.
    np.testing.assert_allclose(np.asarray(out1), np.asarray(ref1), rtol=3e-2, atol=3e-2)

    # --- Test 2: dense random weights/bias to exercise the q / scale path ----
    W2 = jax.random.normal(k_w2, (dim, 3 * dim), jnp.float32) * (dim ** -0.5)
    b2 = jax.random.normal(k_b2, (3 * dim,), jnp.float32) * 0.02

    out2 = jax.block_until_ready(attention_forward_pallas(x, W2, b2, bias_B, d_vec, heads))
    ref2 = attention_forward_ref(x, W2, b2, bias_B, d_vec, heads)
    np.testing.assert_allclose(np.asarray(out2), np.asarray(ref2), rtol=3e-2, atol=3e-2)

    print("KERNEL_OK")
</pallas_src>

<mosaic_0001>
module attributes {stable_mosaic.version = 11 : i64} {
  func.func @_attn_kernel(%arg0: i32, %arg1: i32, %arg2: memref<2x8x32xbf16, #tpu.memory_space<vmem>>, %arg3: memref<32x96xbf16, #tpu.memory_space<vmem>>, %arg4: memref<1x96xf32, #tpu.memory_space<vmem>>, %arg5: memref<8x8xf32, #tpu.memory_space<vmem>>, %arg6: memref<8x1xf32, #tpu.memory_space<vmem>>, %arg7: memref<2x8x32xf32, #tpu.memory_space<vmem>>, %arg8: memref<2x8x32xf32, #tpu.memory_space<vmem>>) attributes {dimension_semantics = [#tpu.dimension_semantics<parallel>, #tpu.dimension_semantics<parallel>], iteration_bounds = array<i64: 1, 1>, scalar_prefetch = 0 : i64, scratch_operands = 1 : i64, tpu.core_type = #tpu.core_type<tc>, window_params = [{transform_indices = @transform_0, window_bounds = array<i64: 2, 8, 32>}, {pipeline_mode = #tpu.pipeline_mode<synchronous>, transform_indices = @transform_1, window_bounds = array<i64: 32, 96>}, {pipeline_mode = #tpu.pipeline_mode<synchronous>, transform_indices = @transform_2, window_bounds = array<i64: 1, 96>}, {pipeline_mode = #tpu.pipeline_mode<synchronous>, transform_indices = @transform_3, window_bounds = array<i64: 8, 8>}, {pipeline_mode = #tpu.pipeline_mode<synchronous>, transform_indices = @transform_4, window_bounds = array<i64: 8, 1>}, {transform_indices = @transform_5, window_bounds = array<i64: 2, 8, 32>}]} {
    %c0 = arith.constant 0 : index
    %c0_0 = arith.constant 0 : index
    %c0_1 = arith.constant 0 : index
    %0 = vector.load %arg2[%c0, %c0_0, %c0_1] : memref<2x8x32xbf16, #tpu.memory_space<vmem>>, vector<2x8x32xbf16>
    %1 = vector.shape_cast %0 : vector<2x8x32xbf16> to vector<16x32xbf16>
    %c0_2 = arith.constant 0 : index
    %c0_3 = arith.constant 0 : index
    %2 = vector.load %arg3[%c0_2, %c0_3] : memref<32x96xbf16, #tpu.memory_space<vmem>>, vector<32x96xbf16>
    %cst = arith.constant dense<0.000000e+00> : vector<16x96xf32>
    %3 = tpu.matmul %1, %2, %cst {dimension_numbers = #tpu.dot_dimension_numbers<[1], [0], [0], [1], [0, 0, 1, 1], [], []>} : vector<16x32xbf16>, vector<32x96xbf16>, vector<16x96xf32> -> vector<16x96xf32>
    %c0_4 = arith.constant 0 : index
    %c0_5 = arith.constant 0 : index
    %4 = vector.load %arg4[%c0_4, %c0_5] : memref<1x96xf32, #tpu.memory_space<vmem>>, vector<1x96xf32>
    %5 = vector.broadcast %4 : vector<1x96xf32> to vector<16x96xf32>
    %6 = arith.addf %3, %5 : vector<16x96xf32>
    %7 = arith.truncf %6 : vector<16x96xf32> to vector<16x96xbf16>
    %8 = vector.shape_cast %7 : vector<16x96xbf16> to vector<2x8x96xbf16>
    %c0_6 = arith.constant 0 : index
    %c0_7 = arith.constant 0 : index
    %9 = vector.load %arg5[%c0_6, %c0_7] : memref<8x8xf32, #tpu.memory_space<vmem>>, vector<8x8xf32>
    %c0_8 = arith.constant 0 : index
    %c0_9 = arith.constant 0 : index
    %10 = vector.load %arg6[%c0_8, %c0_9] : memref<8x1xf32, #tpu.memory_space<vmem>>, vector<8x1xf32>
    %11 = vector.extract_strided_slice %8 {offsets = [0, 0, 0], sizes = [2, 8, 8], strides = [1, 1, 1]} : vector<2x8x96xbf16> to vector<2x8x8xbf16>
    %12 = vector.extract_strided_slice %8 {offsets = [0, 0, 32], sizes = [2, 8, 8], strides = [1, 1, 1]} : vector<2x8x96xbf16> to vector<2x8x8xbf16>
    %13 = vector.extract_strided_slice %8 {offsets = [0, 0, 64], sizes = [2, 8, 8], strides = [1, 1, 1]} : vector<2x8x96xbf16> to vector<2x8x8xbf16>
    %cst_10 = arith.constant dense<0.000000e+00> : vector<2x8x8xf32>
    %14 = tpu.matmul %11, %12, %cst_10 {dimension_numbers = #tpu.dot_dimension_numbers<[2], [2], [1], [1], [0, 0, 0, 1, 1, 1], [0], [0]>} : vector<2x8x8xbf16>, vector<2x8x8xbf16>, vector<2x8x8xf32> -> vector<2x8x8xf32>
    %15 = vector.shape_cast %9 : vector<8x8xf32> to vector<1x8x8xf32>
    %16 = vector.broadcast %15 : vector<1x8x8xf32> to vector<2x8x8xf32>
    %17 = arith.addf %14, %16 : vector<2x8x8xf32>
    %cst_11 = arith.constant dense<0xFF800000> : vector<2x8xf32>
    %18 = vector.multi_reduction <maximumf>, %17, %cst_11 [2] : vector<2x8x8xf32> to vector<2x8xf32>
    %19 = vector.shape_cast %18 : vector<2x8xf32> to vector<2x8x1xf32>
    %20 = vector.broadcast %19 : vector<2x8x1xf32> to vector<2x8x8xf32>
    %21 = arith.subf %17, %20 : vector<2x8x8xf32>
    %22 = math.exp %21 : vector<2x8x8xf32>
    %cst_12 = arith.constant dense<0.000000e+00> : vector<2x8xf32>
    %23 = vector.multi_reduction <add>, %22, %cst_12 [2] : vector<2x8x8xf32> to vector<2x8xf32>
    %24 = vector.shape_cast %23 : vector<2x8xf32> to vector<2x8x1xf32>
    %25 = arith.truncf %22 : vector<2x8x8xf32> to vector<2x8x8xbf16>
    %cst_13 = arith.constant dense<0.000000e+00> : vector<2x8x8xf32>
    %26 = tpu.matmul %25, %13, %cst_13 {dimension_numbers = #tpu.dot_dimension_numbers<[2], [1], [1], [2], [0, 0, 0, 1, 1, 2], [0], [0]>} : vector<2x8x8xbf16>, vector<2x8x8xbf16>, vector<2x8x8xf32> -> vector<2x8x8xf32>
    %27 = tpu.reciprocal %24 {approx = true} : vector<2x8x1xf32> -> vector<2x8x1xf32>
    %28 = vector.shape_cast %10 : vector<8x1xf32> to vector<1x8x1xf32>
    %29 = vector.broadcast %28 : vector<1x8x1xf32> to vector<2x8x1xf32>
    %30 = arith.mulf %29, %27 : vector<2x8x1xf32>
    %31 = vector.broadcast %30 : vector<2x8x1xf32> to vector<2x8x8xf32>
    %32 = arith.mulf %31, %26 : vector<2x8x8xf32>
    %c0_14 = arith.constant 0 : index
    %c0_15 = arith.constant 0 : index
    %c0_16 = arith.constant 0 : index
    %33 = vector.load %arg8[%c0_14, %c0_15, %c0_16] : memref<2x8x32xf32, #tpu.memory_space<vmem>>, vector<2x8x8xf32>
    tpu.vector_store %arg8[%c0_14, %c0_15, %c0_16], %32 {strides = array<i32>} : memref<2x8x32xf32, #tpu.memory_space<vmem>>, vector<2x8x8xf32>,
    %34 = vector.extract_strided_slice %8 {offsets = [0, 0, 8], sizes = [2, 8, 8], strides = [1, 1, 1]} : vector<2x8x96xbf16> to vector<2x8x8xbf16>
    %35 = vector.extract_strided_slice %8 {offsets = [0, 0, 40], sizes = [2, 8, 8], strides = [1, 1, 1]} : vector<2x8x96xbf16> to vector<2x8x8xbf16>
    %36 = vector.extract_strided_slice %8 {offsets = [0, 0, 72], sizes = [2, 8, 8], strides = [1, 1, 1]} : vector<2x8x96xbf16> to vector<2x8x8xbf16>
    %cst_17 = arith.constant dense<0.000000e+00> : vector<2x8x8xf32>
    %37 = tpu.matmul %34, %35, %cst_17 {dimension_numbers = #tpu.dot_dimension_numbers<[2], [2], [1], [1], [0, 0, 0, 1, 1, 1], [0], [0]>} : vector<2x8x8xbf16>, vector<2x8x8xbf16>, vector<2x8x8xf32> -> vector<2x8x8xf32>
    %38 = vector.shape_cast %9 : vector<8x8xf32> to vector<1x8x8xf32>
    %39 = vector.broadcast %38 : vector<1x8x8xf32> to vector<2x8x8xf32>
    %40 = arith.addf %37, %39 : vector<2x8x8xf32>
    %cst_18 = arith.constant dense<0xFF800000> : vector<2x8xf32>
    %41 = vector.multi_reduction <maximumf>, %40, %cst_18 [2] : vector<2x8x8xf32> to vector<2x8xf32>
    %42 = vector.shape_cast %41 : vector<2x8xf32> to vector<2x8x1xf32>
    %43 = vector.broadcast %42 : vector<2x8x1xf32> to vector<2x8x8xf32>
    %44 = arith.subf %40, %43 : vector<2x8x8xf32>
    %45 = math.exp %44 : vector<2x8x8xf32>
    %cst_19 = arith.constant dense<0.000000e+00> : vector<2x8xf32>
    %46 = vector.multi_reduction <add>, %45, %cst_19 [2] : vector<2x8x8xf32> to vector<2x8xf32>
    %47 = vector.shape_cast %46 : vector<2x8xf32> to vector<2x8x1xf32>
    %48 = arith.truncf %45 : vector<2x8x8xf32> to vector<2x8x8xbf16>
    %cst_20 = arith.constant dense<0.000000e+00> : vector<2x8x8xf32>
    %49 = tpu.matmul %48, %36, %cst_20 {dimension_numbers = #tpu.dot_dimension_numbers<[2], [1], [1], [2], [0, 0, 0, 1, 1, 2], [0], [0]>} : vector<2x8x8xbf16>, vector<2x8x8xbf16>, vector<2x8x8xf32> -> vector<2x8x8xf32>
    %50 = tpu.reciprocal %47 {approx = true} : vector<2x8x1xf32> -> vector<2x8x1xf32>
    %51 = vector.shape_cast %10 : vector<8x1xf32> to vector<1x8x1xf32>
    %52 = vector.broadcast %51 : vector<1x8x1xf32> to vector<2x8x1xf32>
    %53 = arith.mulf %52, %50 : vector<2x8x1xf32>
    %54 = vector.broadcast %53 : vector<2x8x1xf32> to vector<2x8x8xf32>
    %55 = arith.mulf %54, %49 : vector<2x8x8xf32>
    %c0_21 = arith.constant 0 : index
    %c0_22 = arith.constant 0 : index
    %c8 = arith.constant 8 : index
    %56 = vector.load %arg8[%c0_21, %c0_22, %c8] : memref<2x8x32xf32, #tpu.memory_space<vmem>>, vector<2x8x8xf32>
    tpu.vector_store %arg8[%c0_21, %c0_22, %c8], %55 {strides = array<i32>} : memref<2x8x32xf32, #tpu.memory_space<vmem>>, vector<2x8x8xf32>,
    %57 = vector.extract_strided_slice %8 {offsets = [0, 0, 16], sizes = [2, 8, 8], strides = [1, 1, 1]} : vector<2x8x96xbf16> to vector<2x8x8xbf16>
    %58 = vector.extract_strided_slice %8 {offsets = [0, 0, 48], sizes = [2, 8, 8], strides = [1, 1, 1]} : vector<2x8x96xbf16> to vector<2x8x8xbf16>
    %59 = vector.extract_strided_slice %8 {offsets = [0, 0, 80], sizes = [2, 8, 8], strides = [1, 1, 1]} : vector<2x8x96xbf16> to vector<2x8x8xbf16>
    %cst_23 = arith.constant dense<0.000000e+00> : vector<2x8x8xf32>
    %60 = tpu.matmul %57, %58, %cst_23 {dimension_numbers = #tpu.dot_dimension_numbers<[2], [2], [1], [1], [0, 0, 0, 1, 1, 1], [0], [0]>} : vector<2x8x8xbf16>, vector<2x8x8xbf16>, vector<2x8x8xf32> -> vector<2x8x8xf32>
    %61 = vector.shape_cast %9 : vector<8x8xf32> to vector<1x8x8xf32>
    %62 = vector.broadcast %61 : vector<1x8x8xf32> to vector<2x8x8xf32>
    %63 = arith.addf %60, %62 : vector<2x8x8xf32>
    %cst_24 = arith.constant dense<0xFF800000> : vector<2x8xf32>
    %64 = vector.multi_reduction <maximumf>, %63, %cst_24 [2] : vector<2x8x8xf32> to vector<2x8xf32>
    %65 = vector.shape_cast %64 : vector<2x8xf32> to vector<2x8x1xf32>
    %66 = vector.broadcast %65 : vector<2x8x1xf32> to vector<2x8x8xf32>
    %67 = arith.subf %63, %66 : vector<2x8x8xf32>
    %68 = math.exp %67 : vector<2x8x8xf32>
    %cst_25 = arith.constant dense<0.000000e+00> : vector<2x8xf32>
    %69 = vector.multi_reduction <add>, %68, %cst_25 [2] : vector<2x8x8xf32> to vector<2x8xf32>
    %70 = vector.shape_cast %69 : vector<2x8xf32> to vector<2x8x1xf32>
    %71 = arith.truncf %68 : vector<2x8x8xf32> to vector<2x8x8xbf16>
    %cst_26 = arith.constant dense<0.000000e+00> : vector<2x8x8xf32>
    %72 = tpu.matmul %71, %59, %cst_26 {dimension_numbers = #tpu.dot_dimension_numbers<[2], [1], [1], [2], [0, 0, 0, 1, 1, 2], [0], [0]>} : vector<2x8x8xbf16>, vector<2x8x8xbf16>, vector<2x8x8xf32> -> vector<2x8x8xf32>
    %73 = tpu.reciprocal %70 {approx = true} : vector<2x8x1xf32> -> vector<2x8x1xf32>
    %74 = vector.shape_cast %10 : vector<8x1xf32> to vector<1x8x1xf32>
    %75 = vector.broadcast %74 : vector<1x8x1xf32> to vector<2x8x1xf32>
    %76 = arith.mulf %75, %73 : vector<2x8x1xf32>
    %77 = vector.broadcast %76 : vector<2x8x1xf32> to vector<2x8x8xf32>
    %78 = arith.mulf %77, %72 : vector<2x8x8xf32>
    %c0_27 = arith.constant 0 : index
    %c0_28 = arith.constant 0 : index
    %c16 = arith.constant 16 : index
    %79 = vector.load %arg8[%c0_27, %c0_28, %c16] : memref<2x8x32xf32, #tpu.memory_space<vmem>>, vector<2x8x8xf32>
    tpu.vector_store %arg8[%c0_27, %c0_28, %c16], %78 {strides = array<i32>} : memref<2x8x32xf32, #tpu.memory_space<vmem>>, vector<2x8x8xf32>,
    %80 = vector.extract_strided_slice %8 {offsets = [0, 0, 24], sizes = [2, 8, 8], strides = [1, 1, 1]} : vector<2x8x96xbf16> to vector<2x8x8xbf16>
    %81 = vector.extract_strided_slice %8 {offsets = [0, 0, 56], sizes = [2, 8, 8], strides = [1, 1, 1]} : vector<2x8x96xbf16> to vector<2x8x8xbf16>
    %82 = vector.extract_strided_slice %8 {offsets = [0, 0, 88], sizes = [2, 8, 8], strides = [1, 1, 1]} : vector<2x8x96xbf16> to vector<2x8x8xbf16>
    %cst_29 = arith.constant dense<0.000000e+00> : vector<2x8x8xf32>
    %83 = tpu.matmul %80, %81, %cst_29 {dimension_numbers = #tpu.dot_dimension_numbers<[2], [2], [1], [1], [0, 0, 0, 1, 1, 1], [0], [0]>} : vector<2x8x8xbf16>, vector<2x8x8xbf16>, vector<2x8x8xf32> -> vector<2x8x8xf32>
    %84 = vector.shape_cast %9 : vector<8x8xf32> to vector<1x8x8xf32>
    %85 = vector.broadcast %84 : vector<1x8x8xf32> to vector<2x8x8xf32>
    %86 = arith.addf %83, %85 : vector<2x8x8xf32>
    %cst_30 = arith.constant dense<0xFF800000> : vector<2x8xf32>
    %87 = vector.multi_reduction <maximumf>, %86, %cst_30 [2] : vector<2x8x8xf32> to vector<2x8xf32>
    %88 = vector.shape_cast %87 : vector<2x8xf32> to vector<2x8x1xf32>
    %89 = vector.broadcast %88 : vector<2x8x1xf32> to vector<2x8x8xf32>
    %90 = arith.subf %86, %89 : vector<2x8x8xf32>
    %91 = math.exp %90 : vector<2x8x8xf32>
    %cst_31 = arith.constant dense<0.000000e+00> : vector<2x8xf32>
    %92 = vector.multi_reduction <add>, %91, %cst_31 [2] : vector<2x8x8xf32> to vector<2x8xf32>
    %93 = vector.shape_cast %92 : vector<2x8xf32> to vector<2x8x1xf32>
    %94 = arith.truncf %91 : vector<2x8x8xf32> to vector<2x8x8xbf16>
    %cst_32 = arith.constant dense<0.000000e+00> : vector<2x8x8xf32>
    %95 = tpu.matmul %94, %82, %cst_32 {dimension_numbers = #tpu.dot_dimension_numbers<[2], [1], [1], [2], [0, 0, 0, 1, 1, 2], [0], [0]>} : vector<2x8x8xbf16>, vector<2x8x8xbf16>, vector<2x8x8xf32> -> vector<2x8x8xf32>
    %96 = tpu.reciprocal %93 {approx = true} : vector<2x8x1xf32> -> vector<2x8x1xf32>
    %97 = vector.shape_cast %10 : vector<8x1xf32> to vector<1x8x1xf32>
    %98 = vector.broadcast %97 : vector<1x8x1xf32> to vector<2x8x1xf32>
    %99 = arith.mulf %98, %96 : vector<2x8x1xf32>
    %100 = vector.broadcast %99 : vector<2x8x1xf32> to vector<2x8x8xf32>
    %101 = arith.mulf %100, %95 : vector<2x8x8xf32>
    %c0_33 = arith.constant 0 : index
    %c0_34 = arith.constant 0 : index
    %c24 = arith.constant 24 : index
    %102 = vector.load %arg8[%c0_33, %c0_34, %c24] : memref<2x8x32xf32, #tpu.memory_space<vmem>>, vector<2x8x8xf32>
    tpu.vector_store %arg8[%c0_33, %c0_34, %c24], %101 {strides = array<i32>} : memref<2x8x32xf32, #tpu.memory_space<vmem>>, vector<2x8x8xf32>,
    %c0_35 = arith.constant 0 : index
    %c0_36 = arith.constant 0 : index
    %c0_37 = arith.constant 0 : index
    %103 = vector.load %arg8[%c0_35, %c0_36, %c0_37] : memref<2x8x32xf32, #tpu.memory_space<vmem>>, vector<2x8x32xf32>
    %c0_38 = arith.constant 0 : index
    %c0_39 = arith.constant 0 : index
    %c0_40 = arith.constant 0 : index
    %104 = vector.load %arg7[%c0_38, %c0_39, %c0_40] : memref<2x8x32xf32, #tpu.memory_space<vmem>>, vector<2x8x32xf32>
    tpu.vector_store %arg7[%c0_38, %c0_39, %c0_40], %103 {strides = array<i32>} : memref<2x8x32xf32, #tpu.memory_space<vmem>>, vector<2x8x32xf32>,
    return
  }
  func.func @transform_0(%arg0: i32, %arg1: i32) -> (i32, i32, i32) {
    %c0_i32 = arith.constant 0 : i32
    %c0_i32_0 = arith.constant 0 : i32
    %c0_i32_1 = arith.constant 0 : i32
    return %arg0, %c0_i32, %c0_i32_0 : i32, i32, i32
  }
  func.func @transform_1(%arg0: i32, %arg1: i32) -> (i32, i32) {
    %c0_i32 = arith.constant 0 : i32
    %c0_i32_0 = arith.constant 0 : i32
    return %c0_i32, %arg1 : i32, i32
  }
  func.func @transform_2(%arg0: i32, %arg1: i32) -> (i32, i32) {
    %c0_i32 = arith.constant 0 : i32
    %c0_i32_0 = arith.constant 0 : i32
    return %c0_i32, %arg1 : i32, i32
  }
  func.func @transform_3(%arg0: i32, %arg1: i32) -> (i32, i32) {
    %c0_i32 = arith.constant 0 : i32
    %c0_i32_0 = arith.constant 0 : i32
    %c0_i32_1 = arith.constant 0 : i32
    return %c0_i32, %c0_i32_0 : i32, i32
  }
  func.func @transform_4(%arg0: i32, %arg1: i32) -> (i32, i32) {
    %c0_i32 = arith.constant 0 : i32
    %c0_i32_0 = arith.constant 0 : i32
    %c0_i32_1 = arith.constant 0 : i32
    return %c0_i32, %c0_i32_0 : i32, i32
  }
  func.func @transform_5(%arg0: i32, %arg1: i32) -> (i32, i32, i32) {
    %c0_i32 = arith.constant 0 : i32
    %c0_i32_0 = arith.constant 0 : i32
    return %arg0, %c0_i32, %arg1 : i32, i32, i32
  }
}

module attributes {stable_mosaic.version = 11 : i64} {
  func.func @_attn_kernel(%arg0: i32, %arg1: i32, %arg2: memref<2x8x32xbf16, #tpu.memory_space<vmem>>, %arg3: memref<32x96xbf16, #tpu.memory_space<vmem>>, %arg4: memref<1x96xf32, #tpu.memory_space<vmem>>, %arg5: memref<8x8xf32, #tpu.memory_space<vmem>>, %arg6: memref<8x1xf32, #tpu.memory_space<vmem>>, %arg7: memref<2x8x32xf32, #tpu.memory_space<vmem>>, %arg8: memref<2x8x32xf32, #tpu.memory_space<vmem>>) attributes {dimension_semantics = [#tpu.dimension_semantics<parallel>, #tpu.dimension_semantics<parallel>], iteration_bounds = array<i64: 1, 1>, scalar_prefetch = 0 : i64, scratch_operands = 1 : i64, tpu.core_type = #tpu.core_type<tc>, window_params = [{transform_indices = @transform_0, window_bounds = array<i64: 2, 8, 32>}, {transform_indices = @transform_1, window_bounds = array<i64: 32, 96>}, {transform_indices = @transform_2, window_bounds = array<i64: 1, 96>}, {pipeline_mode = #tpu.pipeline_mode<synchronous>, transform_indices = @transform_3, window_bounds = array<i64: 8, 8>}, {pipeline_mode = #tpu.pipeline_mode<synchronous>, transform_indices = @transform_4, window_bounds = array<i64: 8, 1>}, {transform_indices = @transform_5, window_bounds = array<i64: 2, 8, 32>}]} {
    %c0 = arith.constant 0 : index
    %c0_0 = arith.constant 0 : index
    %c0_1 = arith.constant 0 : index
    %0 = vector.load %arg2[%c0, %c0_0, %c0_1] : memref<2x8x32xbf16, #tpu.memory_space<vmem>>, vector<2x8x32xbf16>
    %1 = vector.shape_cast %0 : vector<2x8x32xbf16> to vector<16x32xbf16>
    %c0_2 = arith.constant 0 : index
    %c0_3 = arith.constant 0 : index
    %2 = vector.load %arg3[%c0_2, %c0_3] : memref<32x96xbf16, #tpu.memory_space<vmem>>, vector<32x96xbf16>
    %cst = arith.constant dense<0.000000e+00> : vector<16x96xf32>
    %3 = tpu.matmul %1, %2, %cst {dimension_numbers = #tpu.dot_dimension_numbers<[1], [0], [0], [1], [0, 0, 1, 1], [], []>} : vector<16x32xbf16>, vector<32x96xbf16>, vector<16x96xf32> -> vector<16x96xf32>
    %c0_4 = arith.constant 0 : index
    %c0_5 = arith.constant 0 : index
    %4 = vector.load %arg4[%c0_4, %c0_5] : memref<1x96xf32, #tpu.memory_space<vmem>>, vector<1x96xf32>
    %5 = vector.broadcast %4 : vector<1x96xf32> to vector<16x96xf32>
    %6 = arith.addf %3, %5 : vector<16x96xf32>
    %7 = arith.truncf %6 : vector<16x96xf32> to vector<16x96xbf16>
    %8 = vector.shape_cast %7 : vector<16x96xbf16> to vector<2x8x96xbf16>
    %c0_6 = arith.constant 0 : index
    %c0_7 = arith.constant 0 : index
    %9 = vector.load %arg5[%c0_6, %c0_7] : memref<8x8xf32, #tpu.memory_space<vmem>>, vector<8x8xf32>
    %c0_8 = arith.constant 0 : index
    %c0_9 = arith.constant 0 : index
    %10 = vector.load %arg6[%c0_8, %c0_9] : memref<8x1xf32, #tpu.memory_space<vmem>>, vector<8x1xf32>
    %11 = vector.extract_strided_slice %8 {offsets = [0, 0, 0], sizes = [2, 8, 8], strides = [1, 1, 1]} : vector<2x8x96xbf16> to vector<2x8x8xbf16>
    %12 = vector.extract_strided_slice %8 {offsets = [0, 0, 32], sizes = [2, 8, 8], strides = [1, 1, 1]} : vector<2x8x96xbf16> to vector<2x8x8xbf16>
    %13 = vector.extract_strided_slice %8 {offsets = [0, 0, 64], sizes = [2, 8, 8], strides = [1, 1, 1]} : vector<2x8x96xbf16> to vector<2x8x8xbf16>
    %cst_10 = arith.constant dense<0.000000e+00> : vector<2x8x8xf32>
    %14 = tpu.matmul %11, %12, %cst_10 {dimension_numbers = #tpu.dot_dimension_numbers<[2], [2], [1], [1], [0, 0, 0, 1, 1, 1], [0], [0]>} : vector<2x8x8xbf16>, vector<2x8x8xbf16>, vector<2x8x8xf32> -> vector<2x8x8xf32>
    %15 = vector.shape_cast %9 : vector<8x8xf32> to vector<1x8x8xf32>
    %16 = vector.broadcast %15 : vector<1x8x8xf32> to vector<2x8x8xf32>
    %17 = arith.addf %14, %16 : vector<2x8x8xf32>
    %cst_11 = arith.constant dense<0xFF800000> : vector<2x8xf32>
    %18 = vector.multi_reduction <maximumf>, %17, %cst_11 [2] : vector<2x8x8xf32> to vector<2x8xf32>
    %19 = vector.shape_cast %18 : vector<2x8xf32> to vector<2x8x1xf32>
    %20 = vector.broadcast %19 : vector<2x8x1xf32> to vector<2x8x8xf32>
    %21 = arith.subf %17, %20 : vector<2x8x8xf32>
    %22 = math.exp %21 : vector<2x8x8xf32>
    %cst_12 = arith.constant dense<0.000000e+00> : vector<2x8xf32>
    %23 = vector.multi_reduction <add>, %22, %cst_12 [2] : vector<2x8x8xf32> to vector<2x8xf32>
    %24 = vector.shape_cast %23 : vector<2x8xf32> to vector<2x8x1xf32>
    %25 = arith.truncf %22 : vector<2x8x8xf32> to vector<2x8x8xbf16>
    %cst_13 = arith.constant dense<0.000000e+00> : vector<2x8x8xf32>
    %26 = tpu.matmul %25, %13, %cst_13 {dimension_numbers = #tpu.dot_dimension_numbers<[2], [1], [1], [2], [0, 0, 0, 1, 1, 2], [0], [0]>} : vector<2x8x8xbf16>, vector<2x8x8xbf16>, vector<2x8x8xf32> -> vector<2x8x8xf32>
    %27 = tpu.reciprocal %24 {approx = true} : vector<2x8x1xf32> -> vector<2x8x1xf32>
    %28 = vector.shape_cast %10 : vector<8x1xf32> to vector<1x8x1xf32>
    %29 = vector.broadcast %28 : vector<1x8x1xf32> to vector<2x8x1xf32>
    %30 = arith.mulf %29, %27 : vector<2x8x1xf32>
    %31 = vector.broadcast %30 : vector<2x8x1xf32> to vector<2x8x8xf32>
    %32 = arith.mulf %31, %26 : vector<2x8x8xf32>
    %c0_14 = arith.constant 0 : index
    %c0_15 = arith.constant 0 : index
    %c0_16 = arith.constant 0 : index
    %33 = vector.load %arg8[%c0_14, %c0_15, %c0_16] : memref<2x8x32xf32, #tpu.memory_space<vmem>>, vector<2x8x8xf32>
    tpu.vector_store %arg8[%c0_14, %c0_15, %c0_16], %32 {strides = array<i32>} : memref<2x8x32xf32, #tpu.memory_space<vmem>>, vector<2x8x8xf32>,
    %34 = vector.extract_strided_slice %8 {offsets = [0, 0, 8], sizes = [2, 8, 8], strides = [1, 1, 1]} : vector<2x8x96xbf16> to vector<2x8x8xbf16>
    %35 = vector.extract_strided_slice %8 {offsets = [0, 0, 40], sizes = [2, 8, 8], strides = [1, 1, 1]} : vector<2x8x96xbf16> to vector<2x8x8xbf16>
    %36 = vector.extract_strided_slice %8 {offsets = [0, 0, 72], sizes = [2, 8, 8], strides = [1, 1, 1]} : vector<2x8x96xbf16> to vector<2x8x8xbf16>
    %cst_17 = arith.constant dense<0.000000e+00> : vector<2x8x8xf32>
    %37 = tpu.matmul %34, %35, %cst_17 {dimension_numbers = #tpu.dot_dimension_numbers<[2], [2], [1], [1], [0, 0, 0, 1, 1, 1], [0], [0]>} : vector<2x8x8xbf16>, vector<2x8x8xbf16>, vector<2x8x8xf32> -> vector<2x8x8xf32>
    %38 = vector.shape_cast %9 : vector<8x8xf32> to vector<1x8x8xf32>
    %39 = vector.broadcast %38 : vector<1x8x8xf32> to vector<2x8x8xf32>
    %40 = arith.addf %37, %39 : vector<2x8x8xf32>
    %cst_18 = arith.constant dense<0xFF800000> : vector<2x8xf32>
    %41 = vector.multi_reduction <maximumf>, %40, %cst_18 [2] : vector<2x8x8xf32> to vector<2x8xf32>
    %42 = vector.shape_cast %41 : vector<2x8xf32> to vector<2x8x1xf32>
    %43 = vector.broadcast %42 : vector<2x8x1xf32> to vector<2x8x8xf32>
    %44 = arith.subf %40, %43 : vector<2x8x8xf32>
    %45 = math.exp %44 : vector<2x8x8xf32>
    %cst_19 = arith.constant dense<0.000000e+00> : vector<2x8xf32>
    %46 = vector.multi_reduction <add>, %45, %cst_19 [2] : vector<2x8x8xf32> to vector<2x8xf32>
    %47 = vector.shape_cast %46 : vector<2x8xf32> to vector<2x8x1xf32>
    %48 = arith.truncf %45 : vector<2x8x8xf32> to vector<2x8x8xbf16>
    %cst_20 = arith.constant dense<0.000000e+00> : vector<2x8x8xf32>
    %49 = tpu.matmul %48, %36, %cst_20 {dimension_numbers = #tpu.dot_dimension_numbers<[2], [1], [1], [2], [0, 0, 0, 1, 1, 2], [0], [0]>} : vector<2x8x8xbf16>, vector<2x8x8xbf16>, vector<2x8x8xf32> -> vector<2x8x8xf32>
    %50 = tpu.reciprocal %47 {approx = true} : vector<2x8x1xf32> -> vector<2x8x1xf32>
    %51 = vector.shape_cast %10 : vector<8x1xf32> to vector<1x8x1xf32>
    %52 = vector.broadcast %51 : vector<1x8x1xf32> to vector<2x8x1xf32>
    %53 = arith.mulf %52, %50 : vector<2x8x1xf32>
    %54 = vector.broadcast %53 : vector<2x8x1xf32> to vector<2x8x8xf32>
    %55 = arith.mulf %54, %49 : vector<2x8x8xf32>
    %c0_21 = arith.constant 0 : index
    %c0_22 = arith.constant 0 : index
    %c8 = arith.constant 8 : index
    %56 = vector.load %arg8[%c0_21, %c0_22, %c8] : memref<2x8x32xf32, #tpu.memory_space<vmem>>, vector<2x8x8xf32>
    tpu.vector_store %arg8[%c0_21, %c0_22, %c8], %55 {strides = array<i32>} : memref<2x8x32xf32, #tpu.memory_space<vmem>>, vector<2x8x8xf32>,
    %57 = vector.extract_strided_slice %8 {offsets = [0, 0, 16], sizes = [2, 8, 8], strides = [1, 1, 1]} : vector<2x8x96xbf16> to vector<2x8x8xbf16>
    %58 = vector.extract_strided_slice %8 {offsets = [0, 0, 48], sizes = [2, 8, 8], strides = [1, 1, 1]} : vector<2x8x96xbf16> to vector<2x8x8xbf16>
    %59 = vector.extract_strided_slice %8 {offsets = [0, 0, 80], sizes = [2, 8, 8], strides = [1, 1, 1]} : vector<2x8x96xbf16> to vector<2x8x8xbf16>
    %cst_23 = arith.constant dense<0.000000e+00> : vector<2x8x8xf32>
    %60 = tpu.matmul %57, %58, %cst_23 {dimension_numbers = #tpu.dot_dimension_numbers<[2], [2], [1], [1], [0, 0, 0, 1, 1, 1], [0], [0]>} : vector<2x8x8xbf16>, vector<2x8x8xbf16>, vector<2x8x8xf32> -> vector<2x8x8xf32>
    %61 = vector.shape_cast %9 : vector<8x8xf32> to vector<1x8x8xf32>
    %62 = vector.broadcast %61 : vector<1x8x8xf32> to vector<2x8x8xf32>
    %63 = arith.addf %60, %62 : vector<2x8x8xf32>
    %cst_24 = arith.constant dense<0xFF800000> : vector<2x8xf32>
    %64 = vector.multi_reduction <maximumf>, %63, %cst_24 [2] : vector<2x8x8xf32> to vector<2x8xf32>
    %65 = vector.shape_cast %64 : vector<2x8xf32> to vector<2x8x1xf32>
    %66 = vector.broadcast %65 : vector<2x8x1xf32> to vector<2x8x8xf32>
    %67 = arith.subf %63, %66 : vector<2x8x8xf32>
    %68 = math.exp %67 : vector<2x8x8xf32>
    %cst_25 = arith.constant dense<0.000000e+00> : vector<2x8xf32>
    %69 = vector.multi_reduction <add>, %68, %cst_25 [2] : vector<2x8x8xf32> to vector<2x8xf32>
    %70 = vector.shape_cast %69 : vector<2x8xf32> to vector<2x8x1xf32>
    %71 = arith.truncf %68 : vector<2x8x8xf32> to vector<2x8x8xbf16>
    %cst_26 = arith.constant dense<0.000000e+00> : vector<2x8x8xf32>
    %72 = tpu.matmul %71, %59, %cst_26 {dimension_numbers = #tpu.dot_dimension_numbers<[2], [1], [1], [2], [0, 0, 0, 1, 1, 2], [0], [0]>} : vector<2x8x8xbf16>, vector<2x8x8xbf16>, vector<2x8x8xf32> -> vector<2x8x8xf32>
    %73 = tpu.reciprocal %70 {approx = true} : vector<2x8x1xf32> -> vector<2x8x1xf32>
    %74 = vector.shape_cast %10 : vector<8x1xf32> to vector<1x8x1xf32>
    %75 = vector.broadcast %74 : vector<1x8x1xf32> to vector<2x8x1xf32>
    %76 = arith.mulf %75, %73 : vector<2x8x1xf32>
    %77 = vector.broadcast %76 : vector<2x8x1xf32> to vector<2x8x8xf32>
    %78 = arith.mulf %77, %72 : vector<2x8x8xf32>
    %c0_27 = arith.constant 0 : index
    %c0_28 = arith.constant 0 : index
    %c16 = arith.constant 16 : index
    %79 = vector.load %arg8[%c0_27, %c0_28, %c16] : memref<2x8x32xf32, #tpu.memory_space<vmem>>, vector<2x8x8xf32>
    tpu.vector_store %arg8[%c0_27, %c0_28, %c16], %78 {strides = array<i32>} : memref<2x8x32xf32, #tpu.memory_space<vmem>>, vector<2x8x8xf32>,
    %80 = vector.extract_strided_slice %8 {offsets = [0, 0, 24], sizes = [2, 8, 8], strides = [1, 1, 1]} : vector<2x8x96xbf16> to vector<2x8x8xbf16>
    %81 = vector.extract_strided_slice %8 {offsets = [0, 0, 56], sizes = [2, 8, 8], strides = [1, 1, 1]} : vector<2x8x96xbf16> to vector<2x8x8xbf16>
    %82 = vector.extract_strided_slice %8 {offsets = [0, 0, 88], sizes = [2, 8, 8], strides = [1, 1, 1]} : vector<2x8x96xbf16> to vector<2x8x8xbf16>
    %cst_29 = arith.constant dense<0.000000e+00> : vector<2x8x8xf32>
    %83 = tpu.matmul %80, %81, %cst_29 {dimension_numbers = #tpu.dot_dimension_numbers<[2], [2], [1], [1], [0, 0, 0, 1, 1, 1], [0], [0]>} : vector<2x8x8xbf16>, vector<2x8x8xbf16>, vector<2x8x8xf32> -> vector<2x8x8xf32>
    %84 = vector.shape_cast %9 : vector<8x8xf32> to vector<1x8x8xf32>
    %85 = vector.broadcast %84 : vector<1x8x8xf32> to vector<2x8x8xf32>
    %86 = arith.addf %83, %85 : vector<2x8x8xf32>
    %cst_30 = arith.constant dense<0xFF800000> : vector<2x8xf32>
    %87 = vector.multi_reduction <maximumf>, %86, %cst_30 [2] : vector<2x8x8xf32> to vector<2x8xf32>
    %88 = vector.shape_cast %87 : vector<2x8xf32> to vector<2x8x1xf32>
    %89 = vector.broadcast %88 : vector<2x8x1xf32> to vector<2x8x8xf32>
    %90 = arith.subf %86, %89 : vector<2x8x8xf32>
    %91 = math.exp %90 : vector<2x8x8xf32>
    %cst_31 = arith.constant dense<0.000000e+00> : vector<2x8xf32>
    %92 = vector.multi_reduction <add>, %91, %cst_31 [2] : vector<2x8x8xf32> to vector<2x8xf32>
    %93 = vector.shape_cast %92 : vector<2x8xf32> to vector<2x8x1xf32>
    %94 = arith.truncf %91 : vector<2x8x8xf32> to vector<2x8x8xbf16>
    %cst_32 = arith.constant dense<0.000000e+00> : vector<2x8x8xf32>
    %95 = tpu.matmul %94, %82, %cst_32 {dimension_numbers = #tpu.dot_dimension_numbers<[2], [1], [1], [2], [0, 0, 0, 1, 1, 2], [0], [0]>} : vector<2x8x8xbf16>, vector<2x8x8xbf16>, vector<2x8x8xf32> -> vector<2x8x8xf32>
    %96 = tpu.reciprocal %93 {approx = true} : vector<2x8x1xf32> -> vector<2x8x1xf32>
    %97 = vector.shape_cast %10 : vector<8x1xf32> to vector<1x8x1xf32>
    %98 = vector.broadcast %97 : vector<1x8x1xf32> to vector<2x8x1xf32>
    %99 = arith.mulf %98, %96 : vector<2x8x1xf32>
    %100 = vector.broadcast %99 : vector<2x8x1xf32> to vector<2x8x8xf32>
    %101 = arith.mulf %100, %95 : vector<2x8x8xf32>
    %c0_33 = arith.constant 0 : index
    %c0_34 = arith.constant 0 : index
    %c24 = arith.constant 24 : index
    %102 = vector.load %arg8[%c0_33, %c0_34, %c24] : memref<2x8x32xf32, #tpu.memory_space<vmem>>, vector<2x8x8xf32>
    tpu.vector_store %arg8[%c0_33, %c0_34, %c24], %101 {strides = array<i32>} : memref<2x8x32xf32, #tpu.memory_space<vmem>>, vector<2x8x8xf32>,
    %c0_35 = arith.constant 0 : index
    %c0_36 = arith.constant 0 : index
    %c0_37 = arith.constant 0 : index
    %103 = vector.load %arg8[%c0_35, %c0_36, %c0_37] : memref<2x8x32xf32, #tpu.memory_space<vmem>>, vector<2x8x32xf32>
    %c0_38 = arith.constant 0 : index
    %c0_39 = arith.constant 0 : index
    %c0_40 = arith.constant 0 : index
    %104 = vector.load %arg7[%c0_38, %c0_39, %c0_40] : memref<2x8x32xf32, #tpu.memory_space<vmem>>, vector<2x8x32xf32>
    tpu.vector_store %arg7[%c0_38, %c0_39, %c0_40], %103 {strides = array<i32>} : memref<2x8x32xf32, #tpu.memory_space<vmem>>, vector<2x8x32xf32>,
    return
  }
  func.func @transform_0(%arg0: i32, %arg1: i32) -> (i32, i32, i32) {
    %c0_i32 = arith.constant 0 : i32
    %c0_i32_0 = arith.constant 0 : i32
    %c0_i32_1 = arith.constant 0 : i32
    return %arg0, %c0_i32, %c0_i32_0 : i32, i32, i32
  }
  func.func @transform_1(%arg0: i32, %arg1: i32) -> (i32, i32) {
    %c0_i32 = arith.constant 0 : i32
    %c0_i32_0 = arith.constant 0 : i32
    return %c0_i32, %arg1 : i32, i32
  }
  func.func @transform_2(%arg0: i32, %arg1: i32) -> (i32, i32) {
    %c0_i32 = arith.constant 0 : i32
    %c0_i32_0 = arith.constant 0 : i32
    return %c0_i32, %arg1 : i32, i32
  }
  func.func @transform_3(%arg0: i32, %arg1: i32) -> (i32, i32) {
    %c0_i32 = arith.constant 0 : i32
    %c0_i32_0 = arith.constant 0 : i32
    %c0_i32_1 = arith.constant 0 : i32
    return %c0_i32, %c0_i32_0 : i32, i32
  }
  func.func @transform_4(%arg0: i32, %arg1: i32) -> (i32, i32) {
    %c0_i32 = arith.constant 0 : i32
    %c0_i32_0 = arith.constant 0 : i32
    %c0_i32_1 = arith.constant 0 : i32
    return %c0_i32, %c0_i32_0 : i32, i32
  }
  func.func @transform_5(%arg0: i32, %arg1: i32) -> (i32, i32, i32) {
    %c0_i32 = arith.constant 0 : i32
    %c0_i32_0 = arith.constant 0 : i32
    return %arg0, %c0_i32, %arg1 : i32, i32, i32
  }
}

</mosaic_0001>

<llo_original>
// kernel: tpu_custom_call.1
$region0: #{tpu_custom_call.1}
  #allocation0 [shape = 'u32[]', space=smem, size = 0x4, offset = 0x4, fixed_abs, tag = 'smem constant byte address 0x4 - core index']
  #allocation1 [shape = 'u32[144,128]{1,0:T(1,128)}', space=vmem, size = 0x12000, scoped, tag = 'internal scratch']
  #allocation2 [shape = 'f32[2,8,32]{2,1,0:T(8,128)}', space=vmem, size = 0x2000, scoped, tag = 'scratch operand']
  %s0 = inlined_call_operand.vmem [shape: bf16[2,8,32], index: 0, kind: input, shape index: {}]
  %s1 = inlined_call_operand.hbm [shape: bf16[32,96], index: 1, kind: input, shape index: {}]
  %s2 = inlined_call_operand.hbm [shape: f32[1,96], index: 2, kind: input, shape index: {}]
  %s3 = inlined_call_operand.vmem [shape: f32[8,8], index: 3, kind: input, shape index: {}]
  %s4 = inlined_call_operand.vmem [shape: f32[8,1], index: 4, kind: input, shape index: {}]
  %s5 = inlined_call_operand.hbm [shape: f32[2,8,32], index: 5, kind: output, shape index: {}]
  %s6 = sld [smem:[#allocation0]]
  $region38: #{tpu_custom_call.1} parent=0
    _
  %s8 = ssub.s32 1, %s6
  %s9 = scalar_select 0, %s8, %s6
  $region1: #{tpu_custom_call.1} parent=0
    #allocation3 [shape = 'u8[8192]{0}', space=vmem, size = 0x2000, scoped, tag = 'input window, operand 1, single buffered']
    #allocation4 [shape = 's32[1]{0}', space=sflag, size = 0x4, scoped, tag = 'scoped memory for tpu_custom_call.1']
    #allocation5 [shape = 's32[1]{0}', space=sflag, size = 0x4, scoped, tag = 'scoped memory for tpu_custom_call.1']
    #allocation6 [shape = 'u8[512]{0}', space=vmem, size = 0x400, scoped, tag = 'input window, operand 2, single buffered']
    #allocation7 [shape = 's32[1]{0}', space=sflag, size = 0x4, scoped, tag = 'scoped memory for tpu_custom_call.1']
    #allocation8 [shape = 'u8[8192]{0}', space=vmem, size = 0x2000, scoped, tag = 'output window, operand 0, single buffered']
    %10 = vsyncpa [#allocation4], 0
    %11 = vsyncpa [#allocation7], 0
    %12 = vsyncpa [#allocation5], 0
    // Predicated region
    $region2: #{tpu_custom_call.1} parent=1 // pred_check
      _
    $region3: #{tpu_custom_call.1} parent=1 // pred_check_branch
      %14 = sbr.rel (0) target = $region5
    $region4: #{tpu_custom_call.1} parent=1 // pred_region
      _
    $region5: #{tpu_custom_call.1} parent=1 // pred_fallthru
      _
    // Predicated region
    $region6: #{tpu_custom_call.1} parent=1 // pred_check
      _
    $region7: #{tpu_custom_call.1} parent=1 // pred_check_branch
      %16 = sbr.rel (0) target = $region9
    $region8: #{tpu_custom_call.1} parent=1 // pred_region
      %s18 = ssub.s32 256, 256
      %19 = vsyncadd [#allocation4], %s18
      %s20 = sshll.u32 [#allocation3], 4
      %s21 = int_to_ptr.vmem [resolvable:$true] %s20
      %26 = dma.hbm_to_vmem [thread:$0]  %s1, 256, %s21, [#allocation4], 64, 64, 4
    $region9: #{tpu_custom_call.1} parent=1 // pred_fallthru
      _
    // Predicated region
    $region10: #{tpu_custom_call.1} parent=1 // pred_check
      _
    $region11: #{tpu_custom_call.1} parent=1 // pred_check_branch
      %28 = sbr.rel (0) target = $region13
    $region12: #{tpu_custom_call.1} parent=1 // pred_region
      %s30 = ssub.s32 16, 16
      %31 = vsyncadd [#allocation7], %s30
      %s33 = sshll.u32 [#allocation6], 4
      %s34 = int_to_ptr.vmem [resolvable:$true] %s33
      %36 = dma.hbm_to_vmem [thread:$0]  %s2, 16, %s34, [#allocation7]
    $region13: #{tpu_custom_call.1} parent=1 // pred_fallthru
      _
    // Predicated region
    $region14: #{tpu_custom_call.1} parent=1 // pred_check
      _
    $region15: #{tpu_custom_call.1} parent=1 // pred_check_branch
      %38 = sbr.rel (0) target = $region17
    $region16: #{tpu_custom_call.1} parent=1 // pred_region
      _
    $region17: #{tpu_custom_call.1} parent=1 // pred_fallthru
      _
    // Predicated region
    $region18: #{tpu_custom_call.1} parent=1 // pred_check
      _
    $region19: #{tpu_custom_call.1} parent=1 // pred_check_branch
      %40 = sbr.rel (0) target = $region21
    $region20: #{tpu_custom_call.1} parent=1 // pred_region
      _
    $region21: #{tpu_custom_call.1} parent=1 // pred_fallthru
      _
    // Predicated region
    $region22: #{tpu_custom_call.1} parent=1 // pred_check
      _
    $region23: #{tpu_custom_call.1} parent=1 // pred_check_branch
      %42 = sbr.rel (0) target = $region25
    $region24: #{tpu_custom_call.1} parent=1 // pred_region
      %43 = dma.done [#allocation4], 256
    $region25: #{tpu_custom_call.1} parent=1 // pred_fallthru
      _
    // Predicated region
    $region26: #{tpu_custom_call.1} parent=1 // pred_check
      _
    $region27: #{tpu_custom_call.1} parent=1 // pred_check_branch
      %45 = sbr.rel (0) target = $region29
    $region28: #{tpu_custom_call.1} parent=1 // pred_region
      %46 = dma.done [#allocation7], 16
    $region29: #{tpu_custom_call.1} parent=1 // pred_fallthru
      _
    %v48 = vld [vmem:[%s0] sm:$0xf]
    %v49 = vld [vmem:[%s0 + $0x4] sm:$0xf]
    %v50 = vld [vmem:[#allocation3] sm:$0xf]
    %v51 = vld [vmem:[#allocation3 + $0x4] sm:$0xf]
    %v52 = vld [vmem:[#allocation3 + $0x8] sm:$0xf]
    %v53 = vld [vmem:[#allocation3 + $0xc] sm:$0xf]
    %v54 = vld [vmem:[#allocation6] sm:$0x1]
    %v56 = vlaneseq
    %v57 = vshrl.u32 %v56, 7
    %v58 = vsub.s32 0, %v57
    %v59 = vrot.slane %v54, %v58
    %v63 = vunpack.c.l.b16 %v48
    %v64 = vunpack.c.l.b16 %v49
    %v65 = vpack.c.b16 %v64, %v63
    %v70 = vunpack.c.l.b16 %v50
    %v71 = vunpack.c.l.b16 %v51
    %v72 = vunpack.c.l.b16 %v52
    %v73 = vunpack.c.l.b16 %v53
    %v74 = vpack.c.b16 %v71, %v70
    %v75 = vpack.c.b16 %v73, %v72
    %vm78 = vcmask 261120
    %v80 = vsel %vm78, %v65, 0
    %82 = vmatprep.subr.bf16.mxu0 0
    %83 = vmatpush1.bf16.msra.mxu0 %v74
    %84 = vmatprep.subr.bf16.mxu0 0
    %85 = vmatpush1.bf16.msra.mxu0 %v75
    %86 = vmatprep.subr.bf16.mxu0 0
    %87 = vmatpush1.bf16.msra.mxu0 0
    %88 = vmatprep.subr.bf16.mxu0 0
    %89 = vmatpush1.bf16.msra.mxu0 0
    %90 = vmatprep.subr.bf16.mxu0 0
    %91 = vmatpush1.bf16.msra.mxu0 0
    %92 = vmatprep.subr.bf16.mxu0 0
    %93 = vmatpush1.bf16.msra.mxu0 0
    %94 = vmatprep.subr.bf16.mxu0 0
    %95 = vmatpush1.bf16.msra.mxu0 0
    %96 = vmatprep.subr.bf16.mxu0 0
    %97 = vmatpush1.bf16.msra.mxu0 0
    %98 = vmatprep.subr.bf16.mxu0 0
    %99 = vmatpush1.bf16.msra.mxu0 0
    %100 = vmatprep.subr.bf16.mxu0 0
    %101 = vmatpush1.bf16.msra.mxu0 0
    %102 = vmatprep.subr.bf16.mxu0 0
    %103 = vmatpush1.bf16.msra.mxu0 0
    %104 = vmatprep.subr.bf16.mxu0 0
    %105 = vmatpush1.bf16.msra.mxu0 0
    %106 = vmatprep.subr.bf16.mxu0 0
    %107 = vmatpush1.bf16.msra.mxu0 0
    %108 = vmatprep.subr.bf16.mxu0 0
    %109 = vmatpush1.bf16.msra.mxu0 0
    %110 = vmatprep.subr.bf16.mxu0 0
    %111 = vmatpush1.bf16.msra.mxu0 0
    %112 = vmatprep.subr.bf16.mxu0 0
    %113 = vmatpush1.bf16.msra.mxu0 0
    %114 = vmatprep.mubr.bf16.mxu0 0
    %115 = vmatmul.mubr.bf16.gmra.mrb[0].mxu0 %v80
    %v116 = vpop.f32.mrb[0].mxu0
    %v117 = vadd.f32 %v59, %v116
    %v118 = vpop.f32.mrb[0].mxu0
    %v119 = vpop.f32.mrb[0].mxu0
    %v120 = vadd.f32 %v59, %v119
    %v121 = vpop.f32.mrb[0].mxu0
    %122 = vdwg.mxu0
    %v123 = vpack.c.bf16 %v120, %v117
    %v125 = vunpack.c.l.b16 %v123
    %v126 = vunpack.c.h.b16 %v123
    %v127 = vpack.c.b16 %v125, %v125
    %v128 = vpack.c.b16 %v126, %v126
    %v129 = vld [vmem:[%s3] sm:$0xff]
    %v130 = vld [vmem:[%s4] sm:$0xff]
    %131 = vrot.lane.b32.xlu0 %v127, 96
    %v132 = vpop.permute.xlu0 %131
    %vm133 = vcmask 64512
    %v135 = vsel %vm133, %v127, 0
    %v138 = vsel %vm133, %v132, 0
    %140 = vmatprep.subr.bf16.mxu0 0
    %141 = vmatpush1.bf16.xpose.msra.mxu0 %v138
    %142 = vmatprep.subr.bf16.mxu0 0
    %143 = vmatpush1.bf16.xpose.msra.mxu0 0
    %144 = vmatprep.subr.bf16.mxu0 0
    %145 = vmatpush1.bf16.xpose.msra.mxu0 0
    %146 = vmatprep.subr.bf16.mxu0 0
    %147 = vmatpush1.bf16.xpose.msra.mxu0 0
    %148 = vmatprep.subr.bf16.mxu0 0
    %149 = vmatpush1.bf16.xpose.msra.mxu0 0
    %150 = vmatprep.subr.bf16.mxu0 0
    %151 = vmatpush1.bf16.xpose.msra.mxu0 0
    %152 = vmatprep.subr.bf16.mxu0 0
    %153 = vmatpush1.bf16.xpose.msra.mxu0 0
    %154 = vmatprep.subr.bf16.mxu0 0
    %155 = vmatpush1.bf16.xpose.msra.mxu0 0
    %156 = vmatprep.subr.bf16.mxu0 0
    %157 = vmatpush1.bf16.xpose.msra.mxu0 0
    %158 = vmatprep.subr.bf16.mxu0 0
    %159 = vmatpush1.bf16.xpose.msra.mxu0 0
    %160 = vmatprep.subr.bf16.mxu0 0
    %161 = vmatpush1.bf16.xpose.msra.mxu0 0
    %162 = vmatprep.subr.bf16.mxu0 0
    %163 = vmatpush1.bf16.xpose.msra.mxu0 0
    %164 = vmatprep.subr.bf16.mxu0 0
    %165 = vmatpush1.bf16.xpose.msra.mxu0 0
    %166 = vmatprep.subr.bf16.mxu0 0
    %167 = vmatpush1.bf16.xpose.msra.mxu0 0
    %168 = vmatprep.subr.bf16.mxu0 0
    %169 = vmatpush1.bf16.xpose.msra.mxu0 0
    %170 = vmatprep.subr.bf16.mxu0 0
    %171 = vmatpush1.bf16.xpose.msra.mxu0 0
    %172 = vmatprep.mubr.bf16.mxu0 0
    %173 = vmatmul.mubr.bf16.gmra.mrb[0].mxu0 %v135
    %v174 = vpop.f32.mrb[0].mxu0
    %v175 = vadd.f32 %v129, %v174
    %v176 = vpop.f32.mrb[0].mxu0
    %v177 = vpop.f32.mrb[0].mxu0
    %v178 = vpop.f32.mrb[0].mxu0
    %179 = vdwg.mxu0
    %180 = vrot.lane.b32.xlu0 %v128, 96
    %v181 = vpop.permute.xlu0 %180
    %v183 = vsel %vm133, %v128, 0
    %v186 = vsel %vm133, %v181, 0
    %188 = vmatprep.subr.bf16.mxu0 0
    %189 = vmatpush1.bf16.xpose.msra.mxu0 %v186
    %190 = vmatprep.subr.bf16.mxu0 0
    %191 = vmatpush1.bf16.xpose.msra.mxu0 0
    %192 = vmatprep.subr.bf16.mxu0 0
    %193 = vmatpush1.bf16.xpose.msra.mxu0 0
    %194 = vmatprep.subr.bf16.mxu0 0
    %195 = vmatpush1.bf16.xpose.msra.mxu0 0
    %196 = vmatprep.subr.bf16.mxu0 0
    %197 = vmatpush1.bf16.xpose.msra.mxu0 0
    %198 = vmatprep.subr.bf16.mxu0 0
    %199 = vmatpush1.bf16.xpose.msra.mxu0 0
    %200 = vmatprep.subr.bf16.mxu0 0
    %201 = vmatpush1.bf16.xpose.msra.mxu0 0
    %202 = vmatprep.subr.bf16.mxu0 0
    %203 = vmatpush1.bf16.xpose.msra.mxu0 0
    %204 = vmatprep.subr.bf16.mxu0 0
    %205 = vmatpush1.bf16.xpose.msra.mxu0 0
    %206 = vmatprep.subr.bf16.mxu0 0
    %207 = vmatpush1.bf16.xpose.msra.mxu0 0
    %208 = vmatprep.subr.bf16.mxu0 0
    %209 = vmatpush1.bf16.xpose.msra.mxu0 0
    %210 = vmatprep.subr.bf16.mxu0 0
    %211 = vmatpush1.bf16.xpose.msra.mxu0 0
    %212 = vmatprep.subr.bf16.mxu0 0
    %213 = vmatpush1.bf16.xpose.msra.mxu0 0
    %214 = vmatprep.subr.bf16.mxu0 0
    %215 = vmatpush1.bf16.xpose.msra.mxu0 0
    %216 = vmatprep.subr.bf16.mxu0 0
    %217 = vmatpush1.bf16.xpose.msra.mxu0 0
    %218 = vmatprep.subr.bf16.mxu0 0
    %219 = vmatpush1.bf16.xpose.msra.mxu0 0
    %220 = vmatprep.mubr.bf16.mxu0 0
    %221 = vmatmul.mubr.bf16.gmra.mrb[0].mxu0 %v183
    %v222 = vpop.f32.mrb[0].mxu0
    %v223 = vadd.f32 %v129, %v222
    %v224 = vpop.f32.mrb[0].mxu0
    %v225 = vpop.f32.mrb[0].mxu0
    %v226 = vpop.f32.mrb[0].mxu0
    %227 = vdwg.mxu0
    %v228 = vsel %vm133, %v175, -inf
    %229 = vmax.xlane.f32.xlu0 %v228
    %v230 = vpop.xlane.xlu0 %229
    %v231 = vsel %vm133, %v223, -inf
    %232 = vmax.xlane.f32.xlu0 %v231
    %v233 = vpop.xlane.xlu0 %232
    %v234 = vsub.f32 %v175, %v230
    %v235 = vsub.f32 %v223, %v233
    %v236 = vmul.f32 %v234, 1.442695
    %v237 = vpow.pop %v236
    %v238 = vmul.f32 %v235, 1.442695
    %v239 = vpow.pop %v238
    %v240 = vsel %vm133, %v237, 0.0
    %241 = vadd.xlane.f32.xlu0 %v240
    %v242 = vpop.xlane.xlu0 %241
    %v243 = vsel %vm133, %v239, 0.0
    %244 = vadd.xlane.f32.xlu0 %v243
    %v245 = vpop.xlane.xlu0 %244
    %v246 = vpack.c.bf16 %v237, %v237
    %v247 = vpack.c.bf16 %v239, %v239
    %248 = vrot.lane.b32.xlu0 %v127, 64
    %v249 = vpop.permute.xlu0 %248
    %v251 = vsel %vm133, %v246, 0
    %vm253 = vcmask 1043456
    %v255 = vsel %vm253, %v249, 0
    %257 = vmatprep.subr.bf16.mxu0 0
    %258 = vmatpush1.bf16.msra.mxu0 %v255
    %259 = vmatprep.subr.bf16.mxu0 0
    %260 = vmatpush1.bf16.msra.mxu0 0
    %261 = vmatprep.subr.bf16.mxu0 0
    %262 = vmatpush1.bf16.msra.mxu0 0
    %263 = vmatprep.subr.bf16.mxu0 0
    %264 = vmatpush1.bf16.msra.mxu0 0
    %265 = vmatprep.subr.bf16.mxu0 0
    %266 = vmatpush1.bf16.msra.mxu0 0
    %267 = vmatprep.subr.bf16.mxu0 0
    %268 = vmatpush1.bf16.msra.mxu0 0
    %269 = vmatprep.subr.bf16.mxu0 0
    %270 = vmatpush1.bf16.msra.mxu0 0
    %271 = vmatprep.subr.bf16.mxu0 0
    %272 = vmatpush1.bf16.msra.mxu0 0
    %273 = vmatprep.subr.bf16.mxu0 0
    %274 = vmatpush1.bf16.msra.mxu0 0
    %275 = vmatprep.subr.bf16.mxu0 0
    %276 = vmatpush1.bf16.msra.mxu0 0
    %277 = vmatprep.subr.bf16.mxu0 0
    %278 = vmatpush1.bf16.msra.mxu0 0
    %279 = vmatprep.subr.bf16.mxu0 0
    %280 = vmatpush1.bf16.msra.mxu0 0
    %281 = vmatprep.subr.bf16.mxu0 0
    %282 = vmatpush1.bf16.msra.mxu0 0
    %283 = vmatprep.subr.bf16.mxu0 0
    %284 = vmatpush1.bf16.msra.mxu0 0
    %285 = vmatprep.subr.bf16.mxu0 0
    %286 = vmatpush1.bf16.msra.mxu0 0
    %287 = vmatprep.subr.bf16.mxu0 0
    %288 = vmatpush1.bf16.msra.mxu0 0
    %289 = vmatprep.mubr.bf16.mxu0 0
    %290 = vmatmul.mubr.bf16.gmra.mrb[0].mxu0 %v251
    %v291 = vpop.f32.mrb[0].mxu0
    %v292 = vadd.f32 0.0, %v291
    %v293 = vpop.f32.mrb[0].mxu0
    %v294 = vpop.f32.mrb[0].mxu0
    %v295 = vpop.f32.mrb[0].mxu0
    %296 = vdwg.mxu0
    %297 = vrot.lane.b32.xlu0 %v128, 64
    %v298 = vpop.permute.xlu0 %297
    %v300 = vsel %vm133, %v247, 0
    %v303 = vsel %vm253, %v298, 0
    %305 = vmatprep.subr.bf16.mxu0 0
    %306 = vmatpush1.bf16.msra.mxu0 %v303
    %307 = vmatprep.subr.bf16.mxu0 0
    %308 = vmatpush1.bf16.msra.mxu0 0
    %309 = vmatprep.subr.bf16.mxu0 0
    %310 = vmatpush1.bf16.msra.mxu0 0
    %311 = vmatprep.subr.bf16.mxu0 0
    %312 = vmatpush1.bf16.msra.mxu0 0
    %313 = vmatprep.subr.bf16.mxu0 0
    %314 = vmatpush1.bf16.msra.mxu0 0
    %315 = vmatprep.subr.bf16.mxu0 0
    %316 = vmatpush1.bf16.msra.mxu0 0
    %317 = vmatprep.subr.bf16.mxu0 0
    %318 = vmatpush1.bf16.msra.mxu0 0
    %319 = vmatprep.subr.bf16.mxu0 0
    %320 = vmatpush1.bf16.msra.mxu0 0
    %321 = vmatprep.subr.bf16.mxu0 0
    %322 = vmatpush1.bf16.msra.mxu0 0
    %323 = vmatprep.subr.bf16.mxu0 0
    %324 = vmatpush1.bf16.msra.mxu0 0
    %325 = vmatprep.subr.bf16.mxu0 0
    %326 = vmatpush1.bf16.msra.mxu0 0
    %327 = vmatprep.subr.bf16.mxu0 0
    %328 = vmatpush1.bf16.msra.mxu0 0
    %329 = vmatprep.subr.bf16.mxu0 0
    %330 = vmatpush1.bf16.msra.mxu0 0
    %331 = vmatprep.subr.bf16.mxu0 0
    %332 = vmatpush1.bf16.msra.mxu0 0
    %333 = vmatprep.subr.bf16.mxu0 0
    %334 = vmatpush1.bf16.msra.mxu0 0
    %335 = vmatprep.subr.bf16.mxu0 0
    %336 = vmatpush1.bf16.msra.mxu0 0
    %337 = vmatprep.mubr.bf16.mxu0 0
    %338 = vmatmul.mubr.bf16.gmra.mrb[0].mxu0 %v300
    %v339 = vpop.f32.mrb[0].mxu0
    %v340 = vadd.f32 0.0, %v339
    %v341 = vpop.f32.mrb[0].mxu0
    %v342 = vpop.f32.mrb[0].mxu0
    %v343 = vpop.f32.mrb[0].mxu0
    %344 = vdwg.mxu0
    %v345 = vrcp.pop %v242
    %v346 = vrcp.pop %v245
    %v347 = vmul.f32 %v130, %v345
    %v348 = vmul.f32 %v130, %v346
    %350 = vset.pattern.permute.xlu0 0
    %351 = vperm.xlu0 %350, %v347
    %v352 = vpop.permute.xlu0 %351
    %355 = vset.pattern.permute.xlu0 0
    %356 = vperm.xlu0 %355, %v348
    %v357 = vpop.permute.xlu0 %356
    %v359 = vmul.f32 %v352, %v292
    %v360 = vmul.f32 %v357, %v340
    %361 = vst.msk [vmem:[#allocation2] sm:$0xff] %vm133, %v359
    %362 = vst.msk [vmem:[#allocation2 + $0x8] sm:$0xff] %vm133, %v360
    %363 = vrot.lane.b32.xlu0 %v127, 120
    %v364 = vpop.permute.xlu0 %363
    %365 = vrot.lane.b32.xlu0 %v127, 88
    %v366 = vpop.permute.xlu0 %365
    %v368 = vsel %vm133, %v364, 0
    %v371 = vsel %vm133, %v366, 0
    %373 = vmatprep.subr.bf16.mxu0 0
    %374 = vmatpush1.bf16.xpose.msra.mxu0 %v371
    %375 = vmatprep.subr.bf16.mxu0 0
    %376 = vmatpush1.bf16.xpose.msra.mxu0 0
    %377 = vmatprep.subr.bf16.mxu0 0
    %378 = vmatpush1.bf16.xpose.msra.mxu0 0
    %379 = vmatprep.subr.bf16.mxu0 0
    %380 = vmatpush1.bf16.xpose.msra.mxu0 0
    %381 = vmatprep.subr.bf16.mxu0 0
    %382 = vmatpush1.bf16.xpose.msra.mxu0 0
    %383 = vmatprep.subr.bf16.mxu0 0
    %384 = vmatpush1.bf16.xpose.msra.mxu0 0
    %385 = vmatprep.subr.bf16.mxu0 0
    %386 = vmatpush1.bf16.xpose.msra.mxu0 0
    %387 = vmatprep.subr.bf16.mxu0 0
    %388 = vmatpush1.bf16.xpose.msra.mxu0 0
    %389 = vmatprep.subr.bf16.mxu0 0
    %390 = vmatpush1.bf16.xpose.msra.mxu0 0
    %391 = vmatprep.subr.bf16.mxu0 0
    %392 = vmatpush1.bf16.xpose.msra.mxu0 0
    %393 = vmatprep.subr.bf16.mxu0 0
    %394 = vmatpush1.bf16.xpose.msra.mxu0 0
    %395 = vmatprep.subr.bf16.mxu0 0
    %396 = vmatpush1.bf16.xpose.msra.mxu0 0
    %397 = vmatprep.subr.bf16.mxu0 0
    %398 = vmatpush1.bf16.xpose.msra.mxu0 0
    %399 = vmatprep.subr.bf16.mxu0 0
    %400 = vmatpush1.bf16.xpose.msra.mxu0 0
    %401 = vmatprep.subr.bf16.mxu0 0
    %402 = vmatpush1.bf16.xpose.msra.mxu0 0
    %403 = vmatprep.subr.bf16.mxu0 0
    %404 = vmatpush1.bf16.xpose.msra.mxu0 0
    %405 = vmatprep.mubr.bf16.mxu0 0
    %406 = vmatmul.mubr.bf16.gmra.mrb[0].mxu0 %v368
    %v407 = vpop.f32.mrb[0].mxu0
    %v408 = vadd.f32 %v129, %v407
    %v409 = vpop.f32.mrb[0].mxu0
    %v410 = vpop.f32.mrb[0].mxu0
    %v411 = vpop.f32.mrb[0].mxu0
    %412 = vdwg.mxu0
    %413 = vrot.lane.b32.xlu0 %v128, 120
    %v414 = vpop.permute.xlu0 %413
    %415 = vrot.lane.b32.xlu0 %v128, 88
    %v416 = vpop.permute.xlu0 %415
    %v418 = vsel %vm133, %v414, 0
    %v421 = vsel %vm133, %v416, 0
    %423 = vmatprep.subr.bf16.mxu0 0
    %424 = vmatpush1.bf16.xpose.msra.mxu0 %v421
    %425 = vmatprep.subr.bf16.mxu0 0
    %426 = vmatpush1.bf16.xpose.msra.mxu0 0
    %427 = vmatprep.subr.bf16.mxu0 0
    %428 = vmatpush1.bf16.xpose.msra.mxu0 0
    %429 = vmatprep.subr.bf16.mxu0 0
    %430 = vmatpush1.bf16.xpose.msra.mxu0 0
    %431 = vmatprep.subr.bf16.mxu0 0
    %432 = vmatpush1.bf16.xpose.msra.mxu0 0
    %433 = vmatprep.subr.bf16.mxu0 0
    %434 = vmatpush1.bf16.xpose.msra.mxu0 0
    %435 = vmatprep.subr.bf16.mxu0 0
    %436 = vmatpush1.bf16.xpose.msra.mxu0 0
    %437 = vmatprep.subr.bf16.mxu0 0
    %438 = vmatpush1.bf16.xpose.msra.mxu0 0
    %439 = vmatprep.subr.bf16.mxu0 0
    %440 = vmatpush1.bf16.xpose.msra.mxu0 0
    %441 = vmatprep.subr.bf16.mxu0 0
    %442 = vmatpush1.bf16.xpose.msra.mxu0 0
    %443 = vmatprep.subr.bf16.mxu0 0
    %444 = vmatpush1.bf16.xpose.msra.mxu0 0
    %445 = vmatprep.subr.bf16.mxu0 0
    %446 = vmatpush1.bf16.xpose.msra.mxu0 0
    %447 = vmatprep.subr.bf16.mxu0 0
    %448 = vmatpush1.bf16.xpose.msra.mxu0 0
    %449 = vmatprep.subr.bf16.mxu0 0
    %450 = vmatpush1.bf16.xpose.msra.mxu0 0
    %451 = vmatprep.subr.bf16.mxu0 0
    %452 = vmatpush1.bf16.xpose.msra.mxu0 0
    %453 = vmatprep.subr.bf16.mxu0 0
    %454 = vmatpush1.bf16.xpose.msra.mxu0 0
    %455 = vmatprep.mubr.bf16.mxu0 0
    %456 = vmatmul.mubr.bf16.gmra.mrb[0].mxu0 %v418
    %v457 = vpop.f32.mrb[0].mxu0
    %v458 = vadd.f32 %v129, %v457
    %v459 = vpop.f32.mrb[0].mxu0
    %v460 = vpop.f32.mrb[0].mxu0
    %v461 = vpop.f32.mrb[0].mxu0
    %462 = vdwg.mxu0
    %v463 = vsel %vm133, %v408, -inf
    %464 = vmax.xlane.f32.xlu0 %v463
    %v465 = vpop.xlane.xlu0 %464
    %v466 = vsel %vm133, %v458, -inf
    %467 = vmax.xlane.f32.xlu0 %v466
    %v468 = vpop.xlane.xlu0 %467
    %v469 = vsub.f32 %v408, %v465
    %v470 = vsub.f32 %v458, %v468
    %v471 = vmul.f32 %v469, 1.442695
    %v472 = vpow.pop %v471
    %v473 = vmul.f32 %v470, 1.442695
    %v474 = vpow.pop %v473
    %v475 = vsel %vm133, %v472, 0.0
    %476 = vadd.xlane.f32.xlu0 %v475
    %v477 = vpop.xlane.xlu0 %476
    %v478 = vsel %vm133, %v474, 0.0
    %479 = vadd.xlane.f32.xlu0 %v478
    %v480 = vpop.xlane.xlu0 %479
    %v481 = vpack.c.bf16 %v472, %v472
    %v482 = vpack.c.bf16 %v474, %v474
    %483 = vrot.lane.b32.xlu0 %v127, 56
    %v484 = vpop.permute.xlu0 %483
    %v486 = vsel %vm133, %v481, 0
    %v489 = vsel %vm253, %v484, 0
    %491 = vmatprep.subr.bf16.mxu0 0
    %492 = vmatpush1.bf16.msra.mxu0 %v489
    %493 = vmatprep.subr.bf16.mxu0 0
    %494 = vmatpush1.bf16.msra.mxu0 0
    %495 = vmatprep.subr.bf16.mxu0 0
    %496 = vmatpush1.bf16.msra.mxu0 0
    %497 = vmatprep.subr.bf16.mxu0 0
    %498 = vmatpush1.bf16.msra.mxu0 0
    %499 = vmatprep.subr.bf16.mxu0 0
    %500 = vmatpush1.bf16.msra.mxu0 0
    %501 = vmatprep.subr.bf16.mxu0 0
    %502 = vmatpush1.bf16.msra.mxu0 0
    %503 = vmatprep.subr.bf16.mxu0 0
    %504 = vmatpush1.bf16.msra.mxu0 0
    %505 = vmatprep.subr.bf16.mxu0 0
    %506 = vmatpush1.bf16.msra.mxu0 0
    %507 = vmatprep.subr.bf16.mxu0 0
    %508 = vmatpush1.bf16.msra.mxu0 0
    %509 = vmatprep.subr.bf16.mxu0 0
    %510 = vmatpush1.bf16.msra.mxu0 0
    %511 = vmatprep.subr.bf16.mxu0 0
    %512 = vmatpush1.bf16.msra.mxu0 0
    %513 = vmatprep.subr.bf16.mxu0 0
    %514 = vmatpush1.bf16.msra.mxu0 0
    %515 = vmatprep.subr.bf16.mxu0 0
    %516 = vmatpush1.bf16.msra.mxu0 0
    %517 = vmatprep.subr.bf16.mxu0 0
    %518 = vmatpush1.bf16.msra.mxu0 0
    %519 = vmatprep.subr.bf16.mxu0 0
    %520 = vmatpush1.bf16.msra.mxu0 0
    %521 = vmatprep.subr.bf16.mxu0 0
    %522 = vmatpush1.bf16.msra.mxu0 0
    %523 = vmatprep.mubr.bf16.mxu0 0
    %524 = vmatmul.mubr.bf16.gmra.mrb[0].mxu0 %v486
    %v525 = vpop.f32.mrb[0].mxu0
    %v526 = vadd.f32 0.0, %v525
    %v527 = vpop.f32.mrb[0].mxu0
    %v528 = vpop.f32.mrb[0].mxu0
    %v529 = vpop.f32.mrb[0].mxu0
    %530 = vdwg.mxu0
    %531 = vrot.lane.b32.xlu0 %v128, 56
    %v532 = vpop.permute.xlu0 %531
    %v534 = vsel %vm133, %v482, 0
    %v537 = vsel %vm253, %v532, 0
    %539 = vmatprep.subr.bf16.mxu0 0
    %540 = vmatpush1.bf16.msra.mxu0 %v537
    %541 = vmatprep.subr.bf16.mxu0 0
    %542 = vmatpush1.bf16.msra.mxu0 0
    %543 = vmatprep.subr.bf16.mxu0 0
    %544 = vmatpush1.bf16.msra.mxu0 0
    %545 = vmatprep.subr.bf16.mxu0 0
    %546 = vmatpush1.bf16.msra.mxu0 0
    %547 = vmatprep.subr.bf16.mxu0 0
    %548 = vmatpush1.bf16.msra.mxu0 0
    %549 = vmatprep.subr.bf16.mxu0 0
    %550 = vmatpush1.bf16.msra.mxu0 0
    %551 = vmatprep.subr.bf16.mxu0 0
    %552 = vmatpush1.bf16.msra.mxu0 0
    %553 = vmatprep.subr.bf16.mxu0 0
    %554 = vmatpush1.bf16.msra.mxu0 0
    %555 = vmatprep.subr.bf16.mxu0 0
    %556 = vmatpush1.bf16.msra.mxu0 0
    %557 = vmatprep.subr.bf16.mxu0 0
    %558 = vmatpush1.bf16.msra.mxu0 0
    %559 = vmatprep.subr.bf16.mxu0 0
    %560 = vmatpush1.bf16.msra.mxu0 0
    %561 = vmatprep.subr.bf16.mxu0 0
    %562 = vmatpush1.bf16.msra.mxu0 0
    %563 = vmatprep.subr.bf16.mxu0 0
    %564 = vmatpush1.bf16.msra.mxu0 0
    %565 = vmatprep.subr.bf16.mxu0 0
    %566 = vmatpush1.bf16.msra.mxu0 0
    %567 = vmatprep.subr.bf16.mxu0 0
    %568 = vmatpush1.bf16.msra.mxu0 0
    %569 = vmatprep.subr.bf16.mxu0 0
    %570 = vmatpush1.bf16.msra.mxu0 0
    %571 = vmatprep.mubr.bf16.mxu0 0
    %572 = vmatmul.mubr.bf16.gmra.mrb[0].mxu0 %v534
    %v573 = vpop.f32.mrb[0].mxu0
    %v574 = vadd.f32 0.0, %v573
    %v575 = vpop.f32.mrb[0].mxu0
    %v576 = vpop.f32.mrb[0].mxu0
    %v577 = vpop.f32.mrb[0].mxu0
    %578 = vdwg.mxu0
    %v579 = vrcp.pop %v477
    %v580 = vrcp.pop %v480
    %v581 = vmul.f32 %v130, %v579
    %v582 = vmul.f32 %v130, %v580
    %584 = vset.pattern.permute.xlu0 0
    %585 = vperm.xlu0 %584, %v581
    %v586 = vpop.permute.xlu0 %585
    %589 = vset.pattern.permute.xlu0 0
    %590 = vperm.xlu0 %589, %v582
    %v591 = vpop.permute.xlu0 %590
    %v593 = vmul.f32 %v586, %v526
    %v594 = vmul.f32 %v591, %v574
    %597 = vrot.lane.b32.xlu0 %v593, 8
    %v598 = vpop.permute.xlu0 %597
    %599 = vrot.lane.b32.xlu0 %v594, 8
    %v600 = vpop.permute.xlu0 %599
    %vm603 = vcmask 130112
    %604 = vst.msk [vmem:[#allocation2] sm:$0xff] %vm603, %v598
    %605 = vst.msk [vmem:[#allocation2 + $0x8] sm:$0xff] %vm603, %v600
    %606 = vrot.lane.b32.xlu0 %v127, 112
    %v607 = vpop.permute.xlu0 %606
    %608 = vrot.lane.b32.xlu0 %v127, 80
    %v609 = vpop.permute.xlu0 %608
    %v611 = vsel %vm133, %v607, 0
    %v614 = vsel %vm133, %v609, 0
    %616 = vmatprep.subr.bf16.mxu0 0
    %617 = vmatpush1.bf16.xpose.msra.mxu0 %v614
    %618 = vmatprep.subr.bf16.mxu0 0
    %619 = vmatpush1.bf16.xpose.msra.mxu0 0
    %620 = vmatprep.subr.bf16.mxu0 0
    %621 = vmatpush1.bf16.xpose.msra.mxu0 0
    %622 = vmatprep.subr.bf16.mxu0 0
    %623 = vmatpush1.bf16.xpose.msra.mxu0 0
    %624 = vmatprep.subr.bf16.mxu0 0
    %625 = vmatpush1.bf16.xpose.msra.mxu0 0
    %626 = vmatprep.subr.bf16.mxu0 0
    %627 = vmatpush1.bf16.xpose.msra.mxu0 0
    %628 = vmatprep.subr.bf16.mxu0 0
    %629 = vmatpush1.bf16.xpose.msra.mxu0 0
    %630 = vmatprep.subr.bf16.mxu0 0
    %631 = vmatpush1.bf16.xpose.msra.mxu0 0
    %632 = vmatprep.subr.bf16.mxu0 0
    %633 = vmatpush1.bf16.xpose.msra.mxu0 0
    %634 = vmatprep.subr.bf16.mxu0 0
    %635 = vmatpush1.bf16.xpose.msra.mxu0 0
    %636 = vmatprep.subr.bf16.mxu0 0
    %637 = vmatpush1.bf16.xpose.msra.mxu0 0
    %638 = vmatprep.subr.bf16.mxu0 0
    %639 = vmatpush1.bf16.xpose.msra.mxu0 0
    %640 = vmatprep.subr.bf16.mxu0 0
    %641 = vmatpush1.bf16.xpose.msra.mxu0 0
    %642 = vmatprep.subr.bf16.mxu0 0
    %643 = vmatpush1.bf16.xpose.msra.mxu0 0
    %644 = vmatprep.subr.bf16.mxu0 0
    %645 = vmatpush1.bf16.xpose.msra.mxu0 0
    %646 = vmatprep.subr.bf16.mxu0 0
    %647 = vmatpush1.bf16.xpose.msra.mxu0 0
    %648 = vmatprep.mubr.bf16.mxu0 0
    %649 = vmatmul.mubr.bf16.gmra.mrb[0].mxu0 %v611
    %v650 = vpop.f32.mrb[0].mxu0
    %v651 = vadd.f32 %v129, %v650
    %v652 = vpop.f32.mrb[0].mxu0
    %v653 = vpop.f32.mrb[0].mxu0
    %v654 = vpop.f32.mrb[0].mxu0
    %655 = vdwg.mxu0
    %656 = vrot.lane.b32.xlu0 %v128, 112
    %v657 = vpop.permute.xlu0 %656
    %658 = vrot.lane.b32.xlu0 %v128, 80
    %v659 = vpop.permute.xlu0 %658
    %v661 = vsel %vm133, %v657, 0
    %v664 = vsel %vm133, %v659, 0
    %666 = vmatprep.subr.bf16.mxu0 0
    %667 = vmatpush1.bf16.xpose.msra.mxu0 %v664
    %668 = vmatprep.subr.bf16.mxu0 0
    %669 = vmatpush1.bf16.xpose.msra.mxu0 0
    %670 = vmatprep.subr.bf16.mxu0 0
    %671 = vmatpush1.bf16.xpose.msra.mxu0 0
    %672 = vmatprep.subr.bf16.mxu0 0
    %673 = vmatpush1.bf16.xpose.msra.mxu0 0
    %674 = vmatprep.subr.bf16.mxu0 0
    %675 = vmatpush1.bf16.xpose.msra.mxu0 0
    %676 = vmatprep.subr.bf16.mxu0 0
    %677 = vmatpush1.bf16.xpose.msra.mxu0 0
    %678 = vmatprep.subr.bf16.mxu0 0
    %679 = vmatpush1.bf16.xpose.msra.mxu0 0
    %680 = vmatprep.subr.bf16.mxu0 0
    %681 = vmatpush1.bf16.xpose.msra.mxu0 0
    %682 = vmatprep.subr.bf16.mxu0 0
    %683 = vmatpush1.bf16.xpose.msra.mxu0 0
    %684 = vmatprep.subr.bf16.mxu0 0
    %685 = vmatpush1.bf16.xpose.msra.mxu0 0
    %686 = vmatprep.subr.bf16.mxu0 0
    %687 = vmatpush1.bf16.xpose.msra.mxu0 0
    %688 = vmatprep.subr.bf16.mxu0 0
    %689 = vmatpush1.bf16.xpose.msra.mxu0 0
    %690 = vmatprep.subr.bf16.mxu0 0
    %691 = vmatpush1.bf16.xpose.msra.mxu0 0
    %692 = vmatprep.subr.bf16.mxu0 0
    %693 = vmatpush1.bf16.xpose.msra.mxu0 0
    %694 = vmatprep.subr.bf16.mxu0 0
    %695 = vmatpush1.bf16.xpose.msra.mxu0 0
    %696 = vmatprep.subr.bf16.mxu0 0
    %697 = vmatpush1.bf16.xpose.msra.mxu0 0
    %698 = vmatprep.mubr.bf16.mxu0 0
    %699 = vmatmul.mubr.bf16.gmra.mrb[0].mxu0 %v661
    %v700 = vpop.f32.mrb[0].mxu0
    %v701 = vadd.f32 %v129, %v700
    %v702 = vpop.f32.mrb[0].mxu0
    %v703 = vpop.f32.mrb[0].mxu0
    %v704 = vpop.f32.mrb[0].mxu0
    %705 = vdwg.mxu0
    %v706 = vsel %vm133, %v651, -inf
    %707 = vmax.xlane.f32.xlu0 %v706
    %v708 = vpop.xlane.xlu0 %707
    %v709 = vsel %vm133, %v701, -inf
    %710 = vmax.xlane.f32.xlu0 %v709
    %v711 = vpop.xlane.xlu0 %710
    %v712 = vsub.f32 %v651, %v708
    %v713 = vsub.f32 %v701, %v711
    %v714 = vmul.f32 %v712, 1.442695
    %v715 = vpow.pop %v714
    %v716 = vmul.f32 %v713, 1.442695
    %v717 = vpow.pop %v716
    %v718 = vsel %vm133, %v715, 0.0
    %719 = vadd.xlane.f32.xlu0 %v718
    %v720 = vpop.xlane.xlu0 %719
    %v721 = vsel %vm133, %v717, 0.0
    %722 = vadd.xlane.f32.xlu0 %v721
    %v723 = vpop.xlane.xlu0 %722
    %v724 = vpack.c.bf16 %v715, %v715
    %v725 = vpack.c.bf16 %v717, %v717
    %726 = vrot.lane.b32.xlu0 %v127, 48
    %v727 = vpop.permute.xlu0 %726
    %v729 = vsel %vm133, %v724, 0
    %v732 = vsel %vm253, %v727, 0
    %734 = vmatprep.subr.bf16.mxu0 0
    %735 = vmatpush1.bf16.msra.mxu0 %v732
    %736 = vmatprep.subr.bf16.mxu0 0
    %737 = vmatpush1.bf16.msra.mxu0 0
    %738 = vmatprep.subr.bf16.mxu0 0
    %739 = vmatpush1.bf16.msra.mxu0 0
    %740 = vmatprep.subr.bf16.mxu0 0
    %741 = vmatpush1.bf16.msra.mxu0 0
    %742 = vmatprep.subr.bf16.mxu0 0
    %743 = vmatpush1.bf16.msra.mxu0 0
    %744 = vmatprep.subr.bf16.mxu0 0
    %745 = vmatpush1.bf16.msra.mxu0 0
    %746 = vmatprep.subr.bf16.mxu0 0
    %747 = vmatpush1.bf16.msra.mxu0 0
    %748 = vmatprep.subr.bf16.mxu0 0
    %749 = vmatpush1.bf16.msra.mxu0 0
    %750 = vmatprep.subr.bf16.mxu0 0
    %751 = vmatpush1.bf16.msra.mxu0 0
    %752 = vmatprep.subr.bf16.mxu0 0
    %753 = vmatpush1.bf16.msra.mxu0 0
    %754 = vmatprep.subr.bf16.mxu0 0
    %755 = vmatpush1.bf16.msra.mxu0 0
    %756 = vmatprep.subr.bf16.mxu0 0
    %757 = vmatpush1.bf16.msra.mxu0 0
    %758 = vmatprep.subr.bf16.mxu0 0
    %759 = vmatpush1.bf16.msra.mxu0 0
    %760 = vmatprep.subr.bf16.mxu0 0
    %761 = vmatpush1.bf16.msra.mxu0 0
    %762 = vmatprep.subr.bf16.mxu0 0
    %763 = vmatpush1.bf16.msra.mxu0 0
    %764 = vmatprep.subr.bf16.mxu0 0
    %765 = vmatpush1.bf16.msra.mxu0 0
    %766 = vmatprep.mubr.bf16.mxu0 0
    %767 = vmatmul.mubr.bf16.gmra.mrb[0].mxu0 %v729
    %v768 = vpop.f32.mrb[0].mxu0
    %v769 = vadd.f32 0.0, %v768
    %v770 = vpop.f32.mrb[0].mxu0
    %v771 = vpop.f32.mrb[0].mxu0
    %v772 = vpop.f32.mrb[0].mxu0
    %773 = vdwg.mxu0
    %774 = vrot.lane.b32.xlu0 %v128, 48
    %v775 = vpop.permute.xlu0 %774
    %v777 = vsel %vm133, %v725, 0
    %v780 = vsel %vm253, %v775, 0
    %782 = vmatprep.subr.bf16.mxu0 0
    %783 = vmatpush1.bf16.msra.mxu0 %v780
    %784 = vmatprep.subr.bf16.mxu0 0
    %785 = vmatpush1.bf16.msra.mxu0 0
    %786 = vmatprep.subr.bf16.mxu0 0
    %787 = vmatpush1.bf16.msra.mxu0 0
    %788 = vmatprep.subr.bf16.mxu0 0
    %789 = vmatpush1.bf16.msra.mxu0 0
    %790 = vmatprep.subr.bf16.mxu0 0
    %791 = vmatpush1.bf16.msra.mxu0 0
    %792 = vmatprep.subr.bf16.mxu0 0
    %793 = vmatpush1.bf16.msra.mxu0 0
    %794 = vmatprep.subr.bf16.mxu0 0
    %795 = vmatpush1.bf16.msra.mxu0 0
    %796 = vmatprep.subr.bf16.mxu0 0
    %797 = vmatpush1.bf16.msra.mxu0 0
    %798 = vmatprep.subr.bf16.mxu0 0
    %799 = vmatpush1.bf16.msra.mxu0 0
    %800 = vmatprep.subr.bf16.mxu0 0
    %801 = vmatpush1.bf16.msra.mxu0 0
    %802 = vmatprep.subr.bf16.mxu0 0
    %803 = vmatpush1.bf16.msra.mxu0 0
    %804 = vmatprep.subr.bf16.mxu0 0
    %805 = vmatpush1.bf16.msra.mxu0 0
    %806 = vmatprep.subr.bf16.mxu0 0
    %807 = vmatpush1.bf16.msra.mxu0 0
    %808 = vmatprep.subr.bf16.mxu0 0
    %809 = vmatpush1.bf16.msra.mxu0 0
    %810 = vmatprep.subr.bf16.mxu0 0
    %811 = vmatpush1.bf16.msra.mxu0 0
    %812 = vmatprep.subr.bf16.mxu0 0
    %813 = vmatpush1.bf16.msra.mxu0 0
    %814 = vmatprep.mubr.bf16.mxu0 0
    %815 = vmatmul.mubr.bf16.gmra.mrb[0].mxu0 %v777
    %v816 = vpop.f32.mrb[0].mxu0
    %v817 = vadd.f32 0.0, %v816
    %v818 = vpop.f32.mrb[0].mxu0
    %v819 = vpop.f32.mrb[0].mxu0
    %v820 = vpop.f32.mrb[0].mxu0
    %821 = vdwg.mxu0
    %v822 = vrcp.pop %v720
    %v823 = vrcp.pop %v723
    %v824 = vmul.f32 %v130, %v822
    %v825 = vmul.f32 %v130, %v823
    %827 = vset.pattern.permute.xlu0 0
    %828 = vperm.xlu0 %827, %v824
    %v829 = vpop.permute.xlu0 %828
    %832 = vset.pattern.permute.xlu0 0
    %833 = vperm.xlu0 %832, %v825
    %v834 = vpop.permute.xlu0 %833
    %v836 = vmul.f32 %v829, %v769
    %v837 = vmul.f32 %v834, %v817
    %840 = vrot.lane.b32.xlu0 %v836, 16
    %v841 = vpop.permute.xlu0 %840
    %842 = vrot.lane.b32.xlu0 %v837, 16
    %v843 = vpop.permute.xlu0 %842
    %vm846 = vcmask 195712
    %847 = vst.msk [vmem:[#allocation2] sm:$0xff] %vm846, %v841
    %848 = vst.msk [vmem:[#allocation2 + $0x8] sm:$0xff] %vm846, %v843
    %849 = vrot.lane.b32.xlu0 %v127, 104
    %v850 = vpop.permute.xlu0 %849
    %851 = vrot.lane.b32.xlu0 %v127, 72
    %v852 = vpop.permute.xlu0 %851
    %v854 = vsel %vm133, %v850, 0
    %v857 = vsel %vm133, %v852, 0
    %859 = vmatprep.subr.bf16.mxu0 0
    %860 = vmatpush1.bf16.xpose.msra.mxu0 %v857
    %861 = vmatprep.subr.bf16.mxu0 0
    %862 = vmatpush1.bf16.xpose.msra.mxu0 0
    %863 = vmatprep.subr.bf16.mxu0 0
    %864 = vmatpush1.bf16.xpose.msra.mxu0 0
    %865 = vmatprep.subr.bf16.mxu0 0
    %866 = vmatpush1.bf16.xpose.msra.mxu0 0
    %867 = vmatprep.subr.bf16.mxu0 0
    %868 = vmatpush1.bf16.xpose.msra.mxu0 0
    %869 = vmatprep.subr.bf16.mxu0 0
    %870 = vmatpush1.bf16.xpose.msra.mxu0 0
    %871 = vmatprep.subr.bf16.mxu0 0
    %872 = vmatpush1.bf16.xpose.msra.mxu0 0
    %873 = vmatprep.subr.bf16.mxu0 0
    %874 = vmatpush1.bf16.xpose.msra.mxu0 0
    %875 = vmatprep.subr.bf16.mxu0 0
    %876 = vmatpush1.bf16.xpose.msra.mxu0 0
    %877 = vmatprep.subr.bf16.mxu0 0
    %878 = vmatpush1.bf16.xpose.msra.mxu0 0
    %879 = vmatprep.subr.bf16.mxu0 0
    %880 = vmatpush1.bf16.xpose.msra.mxu0 0
    %881 = vmatprep.subr.bf16.mxu0 0
    %882 = vmatpush1.bf16.xpose.msra.mxu0 0
    %883 = vmatprep.subr.bf16.mxu0 0
    %884 = vmatpush1.bf16.xpose.msra.mxu0 0
    %885 = vmatprep.subr.bf16.mxu0 0
    %886 = vmatpush1.bf16.xpose.msra.mxu0 0
    %887 = vmatprep.subr.bf16.mxu0 0
    %888 = vmatpush1.bf16.xpose.msra.mxu0 0
    %889 = vmatprep.subr.bf16.mxu0 0
    %890 = vmatpush1.bf16.xpose.msra.mxu0 0
    %891 = vmatprep.mubr.bf16.mxu0 0
    %892 = vmatmul.mubr.bf16.gmra.mrb[0].mxu0 %v854
    %v893 = vpop.f32.mrb[0].mxu0
    %v894 = vadd.f32 %v129, %v893
    %v895 = vpop.f32.mrb[0].mxu0
    %v896 = vpop.f32.mrb[0].mxu0
    %v897 = vpop.f32.mrb[0].mxu0
    %898 = vdwg.mxu0
    %899 = vrot.lane.b32.xlu0 %v128, 104
    %v900 = vpop.permute.xlu0 %899
    %901 = vrot.lane.b32.xlu0 %v128, 72
    %v902 = vpop.permute.xlu0 %901
    %v904 = vsel %vm133, %v900, 0
    %v907 = vsel %vm133, %v902, 0
    %909 = vmatprep.subr.bf16.mxu0 0
    %910 = vmatpush1.bf16.xpose.msra.mxu0 %v907
    %911 = vmatprep.subr.bf16.mxu0 0
    %912 = vmatpush1.bf16.xpose.msra.mxu0 0
    %913 = vmatprep.subr.bf16.mxu0 0
    %914 = vmatpush1.bf16.xpose.msra.mxu0 0
    %915 = vmatprep.subr.bf16.mxu0 0
    %916 = vmatpush1.bf16.xpose.msra.mxu0 0
    %917 = vmatprep.subr.bf16.mxu0 0
    %918 = vmatpush1.bf16.xpose.msra.mxu0 0
    %919 = vmatprep.subr.bf16.mxu0 0
    %920 = vmatpush1.bf16.xpose.msra.mxu0 0
    %921 = vmatprep.subr.bf16.mxu0 0
    %922 = vmatpush1.bf16.xpose.msra.mxu0 0
    %923 = vmatprep.subr.bf16.mxu0 0
    %924 = vmatpush1.bf16.xpose.msra.mxu0 0
    %925 = vmatprep.subr.bf16.mxu0 0
    %926 = vmatpush1.bf16.xpose.msra.mxu0 0
    %927 = vmatprep.subr.bf16.mxu0 0
    %928 = vmatpush1.bf16.xpose.msra.mxu0 0
    %929 = vmatprep.subr.bf16.mxu0 0
    %930 = vmatpush1.bf16.xpose.msra.mxu0 0
    %931 = vmatprep.subr.bf16.mxu0 0
    %932 = vmatpush1.bf16.xpose.msra.mxu0 0
    %933 = vmatprep.subr.bf16.mxu0 0
    %934 = vmatpush1.bf16.xpose.msra.mxu0 0
    %935 = vmatprep.subr.bf16.mxu0 0
    %936 = vmatpush1.bf16.xpose.msra.mxu0 0
    %937 = vmatprep.subr.bf16.mxu0 0
    %938 = vmatpush1.bf16.xpose.msra.mxu0 0
    %939 = vmatprep.subr.bf16.mxu0 0
    %940 = vmatpush1.bf16.xpose.msra.mxu0 0
    %941 = vmatprep.mubr.bf16.mxu0 0
    %942 = vmatmul.mubr.bf16.gmra.mrb[0].mxu0 %v904
    %v943 = vpop.f32.mrb[0].mxu0
    %v944 = vadd.f32 %v129, %v943
    %v945 = vpop.f32.mrb[0].mxu0
    %v946 = vpop.f32.mrb[0].mxu0
    %v947 = vpop.f32.mrb[0].mxu0
    %948 = vdwg.mxu0
    %v949 = vsel %vm133, %v894, -inf
    %950 = vmax.xlane.f32.xlu0 %v949
    %v951 = vpop.xlane.xlu0 %950
    %v952 = vsel %vm133, %v944, -inf
    %953 = vmax.xlane.f32.xlu0 %v952
    %v954 = vpop.xlane.xlu0 %953
    %v955 = vsub.f32 %v894, %v951
    %v956 = vsub.f32 %v944, %v954
    %v957 = vmul.f32 %v955, 1.442695
    %v958 = vpow.pop %v957
    %v959 = vmul.f32 %v956, 1.442695
    %v960 = vpow.pop %v959
    %v961 = vsel %vm133, %v958, 0.0
    %962 = vadd.xlane.f32.xlu0 %v961
    %v963 = vpop.xlane.xlu0 %962
    %v964 = vsel %vm133, %v960, 0.0
    %965 = vadd.xlane.f32.xlu0 %v964
    %v966 = vpop.xlane.xlu0 %965
    %v967 = vpack.c.bf16 %v958, %v958
    %v968 = vpack.c.bf16 %v960, %v960
    %969 = vrot.lane.b32.xlu0 %v127, 40
    %v970 = vpop.permute.xlu0 %969
    %v972 = vsel %vm133, %v967, 0
    %v975 = vsel %vm253, %v970, 0
    %977 = vmatprep.subr.bf16.mxu0 0
    %978 = vmatpush1.bf16.msra.mxu0 %v975
    %979 = vmatprep.subr.bf16.mxu0 0
    %980 = vmatpush1.bf16.msra.mxu0 0
    %981 = vmatprep.subr.bf16.mxu0 0
    %982 = vmatpush1.bf16.msra.mxu0 0
    %983 = vmatprep.subr.bf16.mxu0 0
    %984 = vmatpush1.bf16.msra.mxu0 0
    %985 = vmatprep.subr.bf16.mxu0 0
    %986 = vmatpush1.bf16.msra.mxu0 0
    %987 = vmatprep.subr.bf16.mxu0 0
    %988 = vmatpush1.bf16.msra.mxu0 0
    %989 = vmatprep.subr.bf16.mxu0 0
    %990 = vmatpush1.bf16.msra.mxu0 0
    %991 = vmatprep.subr.bf16.mxu0 0
    %992 = vmatpush1.bf16.msra.mxu0 0
    %993 = vmatprep.subr.bf16.mxu0 0
    %994 = vmatpush1.bf16.msra.mxu0 0
    %995 = vmatprep.subr.bf16.mxu0 0
    %996 = vmatpush1.bf16.msra.mxu0 0
    %997 = vmatprep.subr.bf16.mxu0 0
    %998 = vmatpush1.bf16.msra.mxu0 0
    %999 = vmatprep.subr.bf16.mxu0 0
    %1000 = vmatpush1.bf16.msra.mxu0 0
    %1001 = vmatprep.subr.bf16.mxu0 0
    %1002 = vmatpush1.bf16.msra.mxu0 0
    %1003 = vmatprep.subr.bf16.mxu0 0
    %1004 = vmatpush1.bf16.msra.mxu0 0
    %1005 = vmatprep.subr.bf16.mxu0 0
    %1006 = vmatpush1.bf16.msra.mxu0 0
    %1007 = vmatprep.subr.bf16.mxu0 0
    %1008 = vmatpush1.bf16.msra.mxu0 0
    %1009 = vmatprep.mubr.bf16.mxu0 0
    %1010 = vmatmul.mubr.bf16.gmra.mrb[0].mxu0 %v972
    %v1011 = vpop.f32.mrb[0].mxu0
    %v1012 = vadd.f32 0.0, %v1011
    %v1013 = vpop.f32.mrb[0].mxu0
    %v1014 = vpop.f32.mrb[0].mxu0
    %v1015 = vpop.f32.mrb[0].mxu0
    %1016 = vdwg.mxu0
    %1017 = vrot.lane.b32.xlu0 %v128, 40
    %v1018 = vpop.permute.xlu0 %1017
    %v1020 = vsel %vm133, %v968, 0
    %v1023 = vsel %vm253, %v1018, 0
    %1025 = vmatprep.subr.bf16.mxu0 0
    %1026 = vmatpush1.bf16.msra.mxu0 %v1023
    %1027 = vmatprep.subr.bf16.mxu0 0
    %1028 = vmatpush1.bf16.msra.mxu0 0
    %1029 = vmatprep.subr.bf16.mxu0 0
    %1030 = vmatpush1.bf16.msra.mxu0 0
    %1031 = vmatprep.subr.bf16.mxu0 0
    %1032 = vmatpush1.bf16.msra.mxu0 0
    %1033 = vmatprep.subr.bf16.mxu0 0
    %1034 = vmatpush1.bf16.msra.mxu0 0
    %1035 = vmatprep.subr.bf16.mxu0 0
    %1036 = vmatpush1.bf16.msra.mxu0 0
    %1037 = vmatprep.subr.bf16.mxu0 0
    %1038 = vmatpush1.bf16.msra.mxu0 0
    %1039 = vmatprep.subr.bf16.mxu0 0
    %1040 = vmatpush1.bf16.msra.mxu0 0
    %1041 = vmatprep.subr.bf16.mxu0 0
    %1042 = vmatpush1.bf16.msra.mxu0 0
    %1043 = vmatprep.subr.bf16.mxu0 0
    %1044 = vmatpush1.bf16.msra.mxu0 0
    %1045 = vmatprep.subr.bf16.mxu0 0
    %1046 = vmatpush1.bf16.msra.mxu0 0
    %1047 = vmatprep.subr.bf16.mxu0 0
    %1048 = vmatpush1.bf16.msra.mxu0 0
    %1049 = vmatprep.subr.bf16.mxu0 0
    %1050 = vmatpush1.bf16.msra.mxu0 0
    %1051 = vmatprep.subr.bf16.mxu0 0
    %1052 = vmatpush1.bf16.msra.mxu0 0
    %1053 = vmatprep.subr.bf16.mxu0 0
    %1054 = vmatpush1.bf16.msra.mxu0 0
    %1055 = vmatprep.subr.bf16.mxu0 0
    %1056 = vmatpush1.bf16.msra.mxu0 0
    %1057 = vmatprep.mubr.bf16.mxu0 0
    %1058 = vmatmul.mubr.bf16.gmra.mrb[0].mxu0 %v1020
    %v1059 = vpop.f32.mrb[0].mxu0
    %v1060 = vadd.f32 0.0, %v1059
    %v1061 = vpop.f32.mrb[0].mxu0
    %v1062 = vpop.f32.mrb[0].mxu0
    %v1063 = vpop.f32.mrb[0].mxu0
    %1064 = vdwg.mxu0
    %v1065 = vrcp.pop %v963
    %v1066 = vrcp.pop %v966
    %v1067 = vmul.f32 %v130, %v1065
    %v1068 = vmul.f32 %v130, %v1066
    %1070 = vset.pattern.permute.xlu0 0
    %1071 = vperm.xlu0 %1070, %v1067
    %v1072 = vpop.permute.xlu0 %1071
    %1075 = vset.pattern.permute.xlu0 0
    %1076 = vperm.xlu0 %1075, %v1068
    %v1077 = vpop.permute.xlu0 %1076
    %v1079 = vmul.f32 %v1072, %v1012
    %v1080 = vmul.f32 %v1077, %v1060
    %1083 = vrot.lane.b32.xlu0 %v1079, 24
    %v1084 = vpop.permute.xlu0 %1083
    %1085 = vrot.lane.b32.xlu0 %v1080, 24
    %v1086 = vpop.permute.xlu0 %1085
    %vm1089 = vcmask 261312
    %1090 = vst.msk [vmem:[#allocation2] sm:$0xff] %vm1089, %v1084
    %1091 = vst.msk [vmem:[#allocation2 + $0x8] sm:$0xff] %vm1089, %v1086
    %v1092 = vld [vmem:[#allocation2] sm:$0xff]
    %v1093 = vld [vmem:[#allocation2 + $0x8] sm:$0xff]
    %1094 = vst.msk [vmem:[#allocation8] sm:$0xff] %vm78, %v1092
    %1095 = vst.msk [vmem:[#allocation8 + $0x8] sm:$0xff] %vm78, %v1093
    // Predicated region
    $region30: #{tpu_custom_call.1} parent=1 // pred_check
      _
    $region31: #{tpu_custom_call.1} parent=1 // pred_check_branch
      %1097 = sbr.rel (0) target = $region33
    $region32: #{tpu_custom_call.1} parent=1 // pred_region
      %s1099 = ssub.s32 256, 256
      %1100 = vsyncadd [#allocation5], %s1099
      %s1101 = sshll.u32 [#allocation8], 4
      %s1102 = int_to_ptr.vmem [resolvable:$true] %s1101
      %1107 = dma.vmem_to_hbm [thread:$0]  %s1102, 256, %s5, [#allocation5], 128, 128, 8
    $region33: #{tpu_custom_call.1} parent=1 // pred_fallthru
      _
    // Predicated region
    $region34: #{tpu_custom_call.1} parent=1 // pred_check
      _
    $region35: #{tpu_custom_call.1} parent=1 // pred_check_branch
      %1109 = sbr.rel (0) target = $region37
    $region36: #{tpu_custom_call.1} parent=1 // pred_region
      %1110 = dma.done [#allocation5], 256
    $region37: #{tpu_custom_call.1} parent=1 // pred_fallthru
      _
    %1111 = vsyncpa [#allocation4], 1
    %1112 = vsyncpa [#allocation7], 1
    %1113 = vsyncpa [#allocation5], 1

// kernel: tpu_custom_call.1
$region0: #{tpu_custom_call.1}
  #allocation0 [shape = 'u32[]', space=smem, size = 0x4, offset = 0x4, fixed_abs, tag = 'smem constant byte address 0x4 - core index']
  #allocation1 [shape = 'u32[144,128]{1,0:T(1,128)}', space=vmem, size = 0x12000, scoped, tag = 'internal scratch']
  #allocation2 [shape = 'f32[2,8,32]{2,1,0:T(8,128)}', space=vmem, size = 0x2000, scoped, tag = 'scratch operand']
  %s0 = inlined_call_operand.vmem [shape: bf16[2,8,32], index: 0, kind: input, shape index: {}]
  %s1 = inlined_call_operand.hbm [shape: bf16[32,96], index: 1, kind: input, shape index: {}]
  %s2 = inlined_call_operand.hbm [shape: f32[1,96], index: 2, kind: input, shape index: {}]
  %s3 = inlined_call_operand.vmem [shape: f32[8,8], index: 3, kind: input, shape index: {}]
  %s4 = inlined_call_operand.vmem [shape: f32[8,1], index: 4, kind: input, shape index: {}]
  %s5 = inlined_call_operand.hbm [shape: f32[2,8,32], index: 5, kind: output, shape index: {}]
  %s6 = sld [smem:[#allocation0]]
  $region38: #{tpu_custom_call.1} parent=0
    _
  %s8 = ssub.s32 1, %s6
  %s9 = scalar_select 0, %s8, %s6
  $region1: #{tpu_custom_call.1} parent=0
    #allocation3 [shape = 'u8[8192]{0}', space=vmem, size = 0x2000, scoped, tag = 'input window, operand 1, single buffered']
    #allocation4 [shape = 's32[1]{0}', space=sflag, size = 0x4, scoped, tag = 'scoped memory for tpu_custom_call.1']
    #allocation5 [shape = 's32[1]{0}', space=sflag, size = 0x4, scoped, tag = 'scoped memory for tpu_custom_call.1']
    #allocation6 [shape = 'u8[512]{0}', space=vmem, size = 0x400, scoped, tag = 'input window, operand 2, single buffered']
    #allocation7 [shape = 's32[1]{0}', space=sflag, size = 0x4, scoped, tag = 'scoped memory for tpu_custom_call.1']
    #allocation8 [shape = 'u8[8192]{0}', space=vmem, size = 0x2000, scoped, tag = 'output window, operand 0, single buffered']
    %10 = vsyncpa [#allocation4], 0
    %11 = vsyncpa [#allocation7], 0
    %12 = vsyncpa [#allocation5], 0
    // Predicated region
    $region2: #{tpu_custom_call.1} parent=1 // pred_check
      _
    $region3: #{tpu_custom_call.1} parent=1 // pred_check_branch
      %14 = sbr.rel (0) target = $region5
    $region4: #{tpu_custom_call.1} parent=1 // pred_region
      _
    $region5: #{tpu_custom_call.1} parent=1 // pred_fallthru
      _
    // Predicated region
    $region6: #{tpu_custom_call.1} parent=1 // pred_check
      _
    $region7: #{tpu_custom_call.1} parent=1 // pred_check_branch
      %16 = sbr.rel (0) target = $region9
    $region8: #{tpu_custom_call.1} parent=1 // pred_region
      %s18 = ssub.s32 256, 256
      %19 = vsyncadd [#allocation4], %s18
      %s20 = sshll.u32 [#allocation3], 4
      %s21 = int_to_ptr.vmem [resolvable:$true] %s20
      %26 = dma.hbm_to_vmem [thread:$0]  %s1, 256, %s21, [#allocation4], 64, 64, 4
    $region9: #{tpu_custom_call.1} parent=1 // pred_fallthru
      _
    // Predicated region
    $region10: #{tpu_custom_call.1} parent=1 // pred_check
      _
    $region11: #{tpu_custom_call.1} parent=1 // pred_check_branch
      %28 = sbr.rel (0) target = $region13
    $region12: #{tpu_custom_call.1} parent=1 // pred_region
      %s30 = ssub.s32 16, 16
      %31 = vsyncadd [#allocation7], %s30
      %s33 = sshll.u32 [#allocation6], 4
      %s34 = int_to_ptr.vmem [resolvable:$true] %s33
      %36 = dma.hbm_to_vmem [thread:$0]  %s2, 16, %s34, [#allocation7]
    $region13: #{tpu_custom_call.1} parent=1 // pred_fallthru
      _
    // Predicated region
    $region14: #{tpu_custom_call.1} parent=1 // pred_check
      _
    $region15: #{tpu_custom_call.1} parent=1 // pred_check_branch
      %38 = sbr.rel (0) target = $region17
    $region16: #{tpu_custom_call.1} parent=1 // pred_region
      _
    $region17: #{tpu_custom_call.1} parent=1 // pred_fallthru
      _
    // Predicated region
    $region18: #{tpu_custom_call.1} parent=1 // pred_check
      _
    $region19: #{tpu_custom_call.1} parent=1 // pred_check_branch
      %40 = sbr.rel (0) target = $region21
    $region20: #{tpu_custom_call.1} parent=1 // pred_region
      _
    $region21: #{tpu_custom_call.1} parent=1 // pred_fallthru
      _
    // Predicated region
    $region22: #{tpu_custom_call.1} parent=1 // pred_check
      _
    $region23: #{tpu_custom_call.1} parent=1 // pred_check_branch
      %42 = sbr.rel (0) target = $region25
    $region24: #{tpu_custom_call.1} parent=1 // pred_region
      %43 = dma.done [#allocation4], 256
    $region25: #{tpu_custom_call.1} parent=1 // pred_fallthru
      _
    // Predicated region
    $region26: #{tpu_custom_call.1} parent=1 // pred_check
      _
    $region27: #{tpu_custom_call.1} parent=1 // pred_check_branch
      %45 = sbr.rel (0) target = $region29
    $region28: #{tpu_custom_call.1} parent=1 // pred_region
      %46 = dma.done [#allocation7], 16
    $region29: #{tpu_custom_call.1} parent=1 // pred_fallthru
      _
    %v48 = vld [vmem:[%s0] sm:$0xf]
    %v49 = vld [vmem:[%s0 + $0x4] sm:$0xf]
    %v50 = vld [vmem:[#allocation3] sm:$0xf]
    %v51 = vld [vmem:[#allocation3 + $0x4] sm:$0xf]
    %v52 = vld [vmem:[#allocation3 + $0x8] sm:$0xf]
    %v53 = vld [vmem:[#allocation3 + $0xc] sm:$0xf]
    %v54 = vld [vmem:[#allocation6] sm:$0x1]
    %v56 = vlaneseq
    %v57 = vshrl.u32 %v56, 7
    %v58 = vsub.s32 0, %v57
    %v59 = vrot.slane %v54, %v58
    %v63 = vunpack.c.l.b16 %v48
    %v64 = vunpack.c.l.b16 %v49
    %v65 = vpack.c.b16 %v64, %v63
    %v70 = vunpack.c.l.b16 %v50
    %v71 = vunpack.c.l.b16 %v51
    %v72 = vunpack.c.l.b16 %v52
    %v73 = vunpack.c.l.b16 %v53
    %v74 = vpack.c.b16 %v71, %v70
    %v75 = vpack.c.b16 %v73, %v72
    %vm78 = vcmask 261120
    %v80 = vsel %vm78, %v65, 0
    %82 = vmatprep.subr.bf16.mxu0 0
    %83 = vmatpush1.bf16.msra.mxu0 %v74
    %84 = vmatprep.subr.bf16.mxu0 0
    %85 = vmatpush1.bf16.msra.mxu0 %v75
    %86 = vmatprep.subr.bf16.mxu0 0
    %87 = vmatpush1.bf16.msra.mxu0 0
    %88 = vmatprep.subr.bf16.mxu0 0
    %89 = vmatpush1.bf16.msra.mxu0 0
    %90 = vmatprep.subr.bf16.mxu0 0
    %91 = vmatpush1.bf16.msra.mxu0 0
    %92 = vmatprep.subr.bf16.mxu0 0
    %93 = vmatpush1.bf16.msra.mxu0 0
    %94 = vmatprep.subr.bf16.mxu0 0
    %95 = vmatpush1.bf16.msra.mxu0 0
    %96 = vmatprep.subr.bf16.mxu0 0
    %97 = vmatpush1.bf16.msra.mxu0 0
    %98 = vmatprep.subr.bf16.mxu0 0
    %99 = vmatpush1.bf16.msra.mxu0 0
    %100 = vmatprep.subr.bf16.mxu0 0
    %101 = vmatpush1.bf16.msra.mxu0 0
    %102 = vmatprep.subr.bf16.mxu0 0
    %103 = vmatpush1.bf16.msra.mxu0 0
    %104 = vmatprep.subr.bf16.mxu0 0
    %105 = vmatpush1.bf16.msra.mxu0 0
    %106 = vmatprep.subr.bf16.mxu0 0
    %107 = vmatpush1.bf16.msra.mxu0 0
    %108 = vmatprep.subr.bf16.mxu0 0
    %109 = vmatpush1.bf16.msra.mxu0 0
    %110 = vmatprep.subr.bf16.mxu0 0
    %111 = vmatpush1.bf16.msra.mxu0 0
    %112 = vmatprep.subr.bf16.mxu0 0
    %113 = vmatpush1.bf16.msra.mxu0 0
    %114 = vmatprep.mubr.bf16.mxu0 0
    %115 = vmatmul.mubr.bf16.gmra.mrb[0].mxu0 %v80
    %v116 = vpop.f32.mrb[0].mxu0
    %v117 = vadd.f32 %v59, %v116
    %v118 = vpop.f32.mrb[0].mxu0
    %v119 = vpop.f32.mrb[0].mxu0
    %v120 = vadd.f32 %v59, %v119
    %v121 = vpop.f32.mrb[0].mxu0
    %122 = vdwg.mxu0
    %v123 = vpack.c.bf16 %v120, %v117
    %v125 = vunpack.c.l.b16 %v123
    %v126 = vunpack.c.h.b16 %v123
    %v127 = vpack.c.b16 %v125, %v125
    %v128 = vpack.c.b16 %v126, %v126
    %v129 = vld [vmem:[%s3] sm:$0xff]
    %v130 = vld [vmem:[%s4] sm:$0xff]
    %131 = vrot.lane.b32.xlu0 %v127, 96
    %v132 = vpop.permute.xlu0 %131
    %vm133 = vcmask 64512
    %v135 = vsel %vm133, %v127, 0
    %v138 = vsel %vm133, %v132, 0
    %140 = vmatprep.subr.bf16.mxu0 0
    %141 = vmatpush1.bf16.xpose.msra.mxu0 %v138
    %142 = vmatprep.subr.bf16.mxu0 0
    %143 = vmatpush1.bf16.xpose.msra.mxu0 0
    %144 = vmatprep.subr.bf16.mxu0 0
    %145 = vmatpush1.bf16.xpose.msra.mxu0 0
    %146 = vmatprep.subr.bf16.mxu0 0
    %147 = vmatpush1.bf16.xpose.msra.mxu0 0
    %148 = vmatprep.subr.bf16.mxu0 0
    %149 = vmatpush1.bf16.xpose.msra.mxu0 0
    %150 = vmatprep.subr.bf16.mxu0 0
    %151 = vmatpush1.bf16.xpose.msra.mxu0 0
    %152 = vmatprep.subr.bf16.mxu0 0
    %153 = vmatpush1.bf16.xpose.msra.mxu0 0
    %154 = vmatprep.subr.bf16.mxu0 0
    %155 = vmatpush1.bf16.xpose.msra.mxu0 0
    %156 = vmatprep.subr.bf16.mxu0 0
    %157 = vmatpush1.bf16.xpose.msra.mxu0 0
    %158 = vmatprep.subr.bf16.mxu0 0
    %159 = vmatpush1.bf16.xpose.msra.mxu0 0
    %160 = vmatprep.subr.bf16.mxu0 0
    %161 = vmatpush1.bf16.xpose.msra.mxu0 0
    %162 = vmatprep.subr.bf16.mxu0 0
    %163 = vmatpush1.bf16.xpose.msra.mxu0 0
    %164 = vmatprep.subr.bf16.mxu0 0
    %165 = vmatpush1.bf16.xpose.msra.mxu0 0
    %166 = vmatprep.subr.bf16.mxu0 0
    %167 = vmatpush1.bf16.xpose.msra.mxu0 0
    %168 = vmatprep.subr.bf16.mxu0 0
    %169 = vmatpush1.bf16.xpose.msra.mxu0 0
    %170 = vmatprep.subr.bf16.mxu0 0
    %171 = vmatpush1.bf16.xpose.msra.mxu0 0
    %172 = vmatprep.mubr.bf16.mxu0 0
    %173 = vmatmul.mubr.bf16.gmra.mrb[0].mxu0 %v135
    %v174 = vpop.f32.mrb[0].mxu0
    %v175 = vadd.f32 %v129, %v174
    %v176 = vpop.f32.mrb[0].mxu0
    %v177 = vpop.f32.mrb[0].mxu0
    %v178 = vpop.f32.mrb[0].mxu0
    %179 = vdwg.mxu0
    %180 = vrot.lane.b32.xlu0 %v128, 96
    %v181 = vpop.permute.xlu0 %180
    %v183 = vsel %vm133, %v128, 0
    %v186 = vsel %vm133, %v181, 0
    %188 = vmatprep.subr.bf16.mxu0 0
    %189 = vmatpush1.bf16.xpose.msra.mxu0 %v186
    %190 = vmatprep.subr.bf16.mxu0 0
    %191 = vmatpush1.bf16.xpose.msra.mxu0 0
    %192 = vmatprep.subr.bf16.mxu0 0
    %193 = vmatpush1.bf16.xpose.msra.mxu0 0
    %194 = vmatprep.subr.bf16.mxu0 0
    %195 = vmatpush1.bf16.xpose.msra.mxu0 0
    %196 = vmatprep.subr.bf16.mxu0 0
    %197 = vmatpush1.bf16.xpose.msra.mxu0 0
    %198 = vmatprep.subr.bf16.mxu0 0
    %199 = vmatpush1.bf16.xpose.msra.mxu0 0
    %200 = vmatprep.subr.bf16.mxu0 0
    %201 = vmatpush1.bf16.xpose.msra.mxu0 0
    %202 = vmatprep.subr.bf16.mxu0 0
    %203 = vmatpush1.bf16.xpose.msra.mxu0 0
    %204 = vmatprep.subr.bf16.mxu0 0
    %205 = vmatpush1.bf16.xpose.msra.mxu0 0
    %206 = vmatprep.subr.bf16.mxu0 0
    %207 = vmatpush1.bf16.xpose.msra.mxu0 0
    %208 = vmatprep.subr.bf16.mxu0 0
    %209 = vmatpush1.bf16.xpose.msra.mxu0 0
    %210 = vmatprep.subr.bf16.mxu0 0
    %211 = vmatpush1.bf16.xpose.msra.mxu0 0
    %212 = vmatprep.subr.bf16.mxu0 0
    %213 = vmatpush1.bf16.xpose.msra.mxu0 0
    %214 = vmatprep.subr.bf16.mxu0 0
    %215 = vmatpush1.bf16.xpose.msra.mxu0 0
    %216 = vmatprep.subr.bf16.mxu0 0
    %217 = vmatpush1.bf16.xpose.msra.mxu0 0
    %218 = vmatprep.subr.bf16.mxu0 0
    %219 = vmatpush1.bf16.xpose.msra.mxu0 0
    %220 = vmatprep.mubr.bf16.mxu0 0
    %221 = vmatmul.mubr.bf16.gmra.mrb[0].mxu0 %v183
    %v222 = vpop.f32.mrb[0].mxu0
    %v223 = vadd.f32 %v129, %v222
    %v224 = vpop.f32.mrb[0].mxu0
    %v225 = vpop.f32.mrb[0].mxu0
    %v226 = vpop.f32.mrb[0].mxu0
    %227 = vdwg.mxu0
    %v228 = vsel %vm133, %v175, -inf
    %229 = vmax.xlane.f32.xlu0 %v228
    %v230 = vpop.xlane.xlu0 %229
    %v231 = vsel %vm133, %v223, -inf
    %232 = vmax.xlane.f32.xlu0 %v231
    %v233 = vpop.xlane.xlu0 %232
    %v234 = vsub.f32 %v175, %v230
    %v235 = vsub.f32 %v223, %v233
    %v236 = vmul.f32 %v234, 1.442695
    %v237 = vpow.pop %v236
    %v238 = vmul.f32 %v235, 1.442695
    %v239 = vpow.pop %v238
    %v240 = vsel %vm133, %v237, 0.0
    %241 = vadd.xlane.f32.xlu0 %v240
    %v242 = vpop.xlane.xlu0 %241
    %v243 = vsel %vm133, %v239, 0.0
    %244 = vadd.xlane.f32.xlu0 %v243
    %v245 = vpop.xlane.xlu0 %244
    %v246 = vpack.c.bf16 %v237, %v237
    %v247 = vpack.c.bf16 %v239, %v239
    %248 = vrot.lane.b32.xlu0 %v127, 64
    %v249 = vpop.permute.xlu0 %248
    %v251 = vsel %vm133, %v246, 0
    %vm253 = vcmask 1043456
    %v255 = vsel %vm253, %v249, 0
    %257 = vmatprep.subr.bf16.mxu0 0
    %258 = vmatpush1.bf16.msra.mxu0 %v255
    %259 = vmatprep.subr.bf16.mxu0 0
    %260 = vmatpush1.bf16.msra.mxu0 0
    %261 = vmatprep.subr.bf16.mxu0 0
    %262 = vmatpush1.bf16.msra.mxu0 0
    %263 = vmatprep.subr.bf16.mxu0 0
    %264 = vmatpush1.bf16.msra.mxu0 0
    %265 = vmatprep.subr.bf16.mxu0 0
    %266 = vmatpush1.bf16.msra.mxu0 0
    %267 = vmatprep.subr.bf16.mxu0 0
    %268 = vmatpush1.bf16.msra.mxu0 0
    %269 = vmatprep.subr.bf16.mxu0 0
    %270 = vmatpush1.bf16.msra.mxu0 0
    %271 = vmatprep.subr.bf16.mxu0 0
    %272 = vmatpush1.bf16.msra.mxu0 0
    %273 = vmatprep.subr.bf16.mxu0 0
    %274 = vmatpush1.bf16.msra.mxu0 0
    %275 = vmatprep.subr.bf16.mxu0 0
    %276 = vmatpush1.bf16.msra.mxu0 0
    %277 = vmatprep.subr.bf16.mxu0 0
    %278 = vmatpush1.bf16.msra.mxu0 0
    %279 = vmatprep.subr.bf16.mxu0 0
    %280 = vmatpush1.bf16.msra.mxu0 0
    %281 = vmatprep.subr.bf16.mxu0 0
    %282 = vmatpush1.bf16.msra.mxu0 0
    %283 = vmatprep.subr.bf16.mxu0 0
    %284 = vmatpush1.bf16.msra.mxu0 0
    %285 = vmatprep.subr.bf16.mxu0 0
    %286 = vmatpush1.bf16.msra.mxu0 0
    %287 = vmatprep.subr.bf16.mxu0 0
    %288 = vmatpush1.bf16.msra.mxu0 0
    %289 = vmatprep.mubr.bf16.mxu0 0
    %290 = vmatmul.mubr.bf16.gmra.mrb[0].mxu0 %v251
    %v291 = vpop.f32.mrb[0].mxu0
    %v292 = vadd.f32 0.0, %v291
    %v293 = vpop.f32.mrb[0].mxu0
    %v294 = vpop.f32.mrb[0].mxu0
    %v295 = vpop.f32.mrb[0].mxu0
    %296 = vdwg.mxu0
    %297 = vrot.lane.b32.xlu0 %v128, 64
    %v298 = vpop.permute.xlu0 %297
    %v300 = vsel %vm133, %v247, 0
    %v303 = vsel %vm253, %v298, 0
    %305 = vmatprep.subr.bf16.mxu0 0
    %306 = vmatpush1.bf16.msra.mxu0 %v303
    %307 = vmatprep.subr.bf16.mxu0 0
    %308 = vmatpush1.bf16.msra.mxu0 0
    %309 = vmatprep.subr.bf16.mxu0 0
    %310 = vmatpush1.bf16.msra.mxu0 0
    %311 = vmatprep.subr.bf16.mxu0 0
    %312 = vmatpush1.bf16.msra.mxu0 0
    %313 = vmatprep.subr.bf16.mxu0 0
    %314 = vmatpush1.bf16.msra.mxu0 0
    %315 = vmatprep.subr.bf16.mxu0 0
    %316 = vmatpush1.bf16.msra.mxu0 0
    %317 = vmatprep.subr.bf16.mxu0 0
    %318 = vmatpush1.bf16.msra.mxu0 0
    %319 = vmatprep.subr.bf16.mxu0 0
    %320 = vmatpush1.bf16.msra.mxu0 0
    %321 = vmatprep.subr.bf16.mxu0 0
    %322 = vmatpush1.bf16.msra.mxu0 0
    %323 = vmatprep.subr.bf16.mxu0 0
    %324 = vmatpush1.bf16.msra.mxu0 0
    %325 = vmatprep.subr.bf16.mxu0 0
    %326 = vmatpush1.bf16.msra.mxu0 0
    %327 = vmatprep.subr.bf16.mxu0 0
    %328 = vmatpush1.bf16.msra.mxu0 0
    %329 = vmatprep.subr.bf16.mxu0 0
    %330 = vmatpush1.bf16.msra.mxu0 0
    %331 = vmatprep.subr.bf16.mxu0 0
    %332 = vmatpush1.bf16.msra.mxu0 0
    %333 = vmatprep.subr.bf16.mxu0 0
    %334 = vmatpush1.bf16.msra.mxu0 0
    %335 = vmatprep.subr.bf16.mxu0 0
    %336 = vmatpush1.bf16.msra.mxu0 0
    %337 = vmatprep.mubr.bf16.mxu0 0
    %338 = vmatmul.mubr.bf16.gmra.mrb[0].mxu0 %v300
    %v339 = vpop.f32.mrb[0].mxu0
    %v340 = vadd.f32 0.0, %v339
    %v341 = vpop.f32.mrb[0].mxu0
    %v342 = vpop.f32.mrb[0].mxu0
    %v343 = vpop.f32.mrb[0].mxu0
    %344 = vdwg.mxu0
    %v345 = vrcp.pop %v242
    %v346 = vrcp.pop %v245
    %v347 = vmul.f32 %v130, %v345
    %v348 = vmul.f32 %v130, %v346
    %350 = vset.pattern.permute.xlu0 0
    %351 = vperm.xlu0 %350, %v347
    %v352 = vpop.permute.xlu0 %351
    %355 = vset.pattern.permute.xlu0 0
    %356 = vperm.xlu0 %355, %v348
    %v357 = vpop.permute.xlu0 %356
    %v359 = vmul.f32 %v352, %v292
    %v360 = vmul.f32 %v357, %v340
    %361 = vst.msk [vmem:[#allocation2] sm:$0xff] %vm133, %v359
    %362 = vst.msk [vmem:[#allocation2 + $0x8] sm:$0xff] %vm133, %v360
    %363 = vrot.lane.b32.xlu0 %v127, 120
    %v364 = vpop.permute.xlu0 %363
    %365 = vrot.lane.b32.xlu0 %v127, 88
    %v366 = vpop.permute.xlu0 %365
    %v368 = vsel %vm133, %v364, 0
    %v371 = vsel %vm133, %v366, 0
    %373 = vmatprep.subr.bf16.mxu0 0
    %374 = vmatpush1.bf16.xpose.msra.mxu0 %v371
    %375 = vmatprep.subr.bf16.mxu0 0
    %376 = vmatpush1.bf16.xpose.msra.mxu0 0
    %377 = vmatprep.subr.bf16.mxu0 0
    %378 = vmatpush1.bf16.xpose.msra.mxu0 0
    %379 = vmatprep.subr.bf16.mxu0 0
    %380 = vmatpush1.bf16.xpose.msra.mxu0 0
    %381 = vmatprep.subr.bf16.mxu0 0
    %382 = vmatpush1.bf16.xpose.msra.mxu0 0
    %383 = vmatprep.subr.bf16.mxu0 0
    %384 = vmatpush1.bf16.xpose.msra.mxu0 0
    %385 = vmatprep.subr.bf16.mxu0 0
    %386 = vmatpush1.bf16.xpose.msra.mxu0 0
    %387 = vmatprep.subr.bf16.mxu0 0
    %388 = vmatpush1.bf16.xpose.msra.mxu0 0
    %389 = vmatprep.subr.bf16.mxu0 0
    %390 = vmatpush1.bf16.xpose.msra.mxu0 0
    %391 = vmatprep.subr.bf16.mxu0 0
    %392 = vmatpush1.bf16.xpose.msra.mxu0 0
    %393 = vmatprep.subr.bf16.mxu0 0
    %394 = vmatpush1.bf16.xpose.msra.mxu0 0
    %395 = vmatprep.subr.bf16.mxu0 0
    %396 = vmatpush1.bf16.xpose.msra.mxu0 0
    %397 = vmatprep.subr.bf16.mxu0 0
    %398 = vmatpush1.bf16.xpose.msra.mxu0 0
    %399 = vmatprep.subr.bf16.mxu0 0
    %400 = vmatpush1.bf16.xpose.msra.mxu0 0
    %401 = vmatprep.subr.bf16.mxu0 0
    %402 = vmatpush1.bf16.xpose.msra.mxu0 0
    %403 = vmatprep.subr.bf16.mxu0 0
    %404 = vmatpush1.bf16.xpose.msra.mxu0 0
    %405 = vmatprep.mubr.bf16.mxu0 0
    %406 = vmatmul.mubr.bf16.gmra.mrb[0].mxu0 %v368
    %v407 = vpop.f32.mrb[0].mxu0
    %v408 = vadd.f32 %v129, %v407
    %v409 = vpop.f32.mrb[0].mxu0
    %v410 = vpop.f32.mrb[0].mxu0
    %v411 = vpop.f32.mrb[0].mxu0
    %412 = vdwg.mxu0
    %413 = vrot.lane.b32.xlu0 %v128, 120
    %v414 = vpop.permute.xlu0 %413
    %415 = vrot.lane.b32.xlu0 %v128, 88
    %v416 = vpop.permute.xlu0 %415
    %v418 = vsel %vm133, %v414, 0
    %v421 = vsel %vm133, %v416, 0
    %423 = vmatprep.subr.bf16.mxu0 0
    %424 = vmatpush1.bf16.xpose.msra.mxu0 %v421
    %425 = vmatprep.subr.bf16.mxu0 0
    %426 = vmatpush1.bf16.xpose.msra.mxu0 0
    %427 = vmatprep.subr.bf16.mxu0 0
    %428 = vmatpush1.bf16.xpose.msra.mxu0 0
    %429 = vmatprep.subr.bf16.mxu0 0
    %430 = vmatpush1.bf16.xpose.msra.mxu0 0
    %431 = vmatprep.subr.bf16.mxu0 0
    %432 = vmatpush1.bf16.xpose.msra.mxu0 0
    %433 = vmatprep.subr.bf16.mxu0 0
    %434 = vmatpush1.bf16.xpose.msra.mxu0 0
    %435 = vmatprep.subr.bf16.mxu0 0
    %436 = vmatpush1.bf16.xpose.msra.mxu0 0
    %437 = vmatprep.subr.bf16.mxu0 0
    %438 = vmatpush1.bf16.xpose.msra.mxu0 0
    %439 = vmatprep.subr.bf16.mxu0 0
    %440 = vmatpush1.bf16.xpose.msra.mxu0 0
    %441 = vmatprep.subr.bf16.mxu0 0
    %442 = vmatpush1.bf16.xpose.msra.mxu0 0
    %443 = vmatprep.subr.bf16.mxu0 0
    %444 = vmatpush1.bf16.xpose.msra.mxu0 0
    %445 = vmatprep.subr.bf16.mxu0 0
    %446 = vmatpush1.bf16.xpose.msra.mxu0 0
    %447 = vmatprep.subr.bf16.mxu0 0
    %448 = vmatpush1.bf16.xpose.msra.mxu0 0
    %449 = vmatprep.subr.bf16.mxu0 0
    %450 = vmatpush1.bf16.xpose.msra.mxu0 0
    %451 = vmatprep.subr.bf16.mxu0 0
    %452 = vmatpush1.bf16.xpose.msra.mxu0 0
    %453 = vmatprep.subr.bf16.mxu0 0
    %454 = vmatpush1.bf16.xpose.msra.mxu0 0
    %455 = vmatprep.mubr.bf16.mxu0 0
    %456 = vmatmul.mubr.bf16.gmra.mrb[0].mxu0 %v418
    %v457 = vpop.f32.mrb[0].mxu0
    %v458 = vadd.f32 %v129, %v457
    %v459 = vpop.f32.mrb[0].mxu0
    %v460 = vpop.f32.mrb[0].mxu0
    %v461 = vpop.f32.mrb[0].mxu0
    %462 = vdwg.mxu0
    %v463 = vsel %vm133, %v408, -inf
    %464 = vmax.xlane.f32.xlu0 %v463
    %v465 = vpop.xlane.xlu0 %464
    %v466 = vsel %vm133, %v458, -inf
    %467 = vmax.xlane.f32.xlu0 %v466
    %v468 = vpop.xlane.xlu0 %467
    %v469 = vsub.f32 %v408, %v465
    %v470 = vsub.f32 %v458, %v468
    %v471 = vmul.f32 %v469, 1.442695
    %v472 = vpow.pop %v471
    %v473 = vmul.f32 %v470, 1.442695
    %v474 = vpow.pop %v473
    %v475 = vsel %vm133, %v472, 0.0
    %476 = vadd.xlane.f32.xlu0 %v475
    %v477 = vpop.xlane.xlu0 %476
    %v478 = vsel %vm133, %v474, 0.0
    %479 = vadd.xlane.f32.xlu0 %v478
    %v480 = vpop.xlane.xlu0 %479
    %v481 = vpack.c.bf16 %v472, %v472
    %v482 = vpack.c.bf16 %v474, %v474
    %483 = vrot.lane.b32.xlu0 %v127, 56
    %v484 = vpop.permute.xlu0 %483
    %v486 = vsel %vm133, %v481, 0
    %v489 = vsel %vm253, %v484, 0
    %491 = vmatprep.subr.bf16.mxu0 0
    %492 = vmatpush1.bf16.msra.mxu0 %v489
    %493 = vmatprep.subr.bf16.mxu0 0
    %494 = vmatpush1.bf16.msra.mxu0 0
    %495 = vmatprep.subr.bf16.mxu0 0
    %496 = vmatpush1.bf16.msra.mxu0 0
    %497 = vmatprep.subr.bf16.mxu0 0
    %498 = vmatpush1.bf16.msra.mxu0 0
    %499 = vmatprep.subr.bf16.mxu0 0
    %500 = vmatpush1.bf16.msra.mxu0 0
    %501 = vmatprep.subr.bf16.mxu0 0
    %502 = vmatpush1.bf16.msra.mxu0 0
    %503 = vmatprep.subr.bf16.mxu0 0
    %504 = vmatpush1.bf16.msra.mxu0 0
    %505 = vmatprep.subr.bf16.mxu0 0
    %506 = vmatpush1.bf16.msra.mxu0 0
    %507 = vmatprep.subr.bf16.mxu0 0
    %508 = vmatpush1.bf16.msra.mxu0 0
    %509 = vmatprep.subr.bf16.mxu0 0
    %510 = vmatpush1.bf16.msra.mxu0 0
    %511 = vmatprep.subr.bf16.mxu0 0
    %512 = vmatpush1.bf16.msra.mxu0 0
    %513 = vmatprep.subr.bf16.mxu0 0
    %514 = vmatpush1.bf16.msra.mxu0 0
    %515 = vmatprep.subr.bf16.mxu0 0
    %516 = vmatpush1.bf16.msra.mxu0 0
    %517 = vmatprep.subr.bf16.mxu0 0
    %518 = vmatpush1.bf16.msra.mxu0 0
    %519 = vmatprep.subr.bf16.mxu0 0
    %520 = vmatpush1.bf16.msra.mxu0 0
    %521 = vmatprep.subr.bf16.mxu0 0
    %522 = vmatpush1.bf16.msra.mxu0 0
    %523 = vmatprep.mubr.bf16.mxu0 0
    %524 = vmatmul.mubr.bf16.gmra.mrb[0].mxu0 %v486
    %v525 = vpop.f32.mrb[0].mxu0
    %v526 = vadd.f32 0.0, %v525
    %v527 = vpop.f32.mrb[0].mxu0
    %v528 = vpop.f32.mrb[0].mxu0
    %v529 = vpop.f32.mrb[0].mxu0
    %530 = vdwg.mxu0
    %531 = vrot.lane.b32.xlu0 %v128, 56
    %v532 = vpop.permute.xlu0 %531
    %v534 = vsel %vm133, %v482, 0
    %v537 = vsel %vm253, %v532, 0
    %539 = vmatprep.subr.bf16.mxu0 0
    %540 = vmatpush1.bf16.msra.mxu0 %v537
    %541 = vmatprep.subr.bf16.mxu0 0
    %542 = vmatpush1.bf16.msra.mxu0 0
    %543 = vmatprep.subr.bf16.mxu0 0
    %544 = vmatpush1.bf16.msra.mxu0 0
    %545 = vmatprep.subr.bf16.mxu0 0
    %546 = vmatpush1.bf16.msra.mxu0 0
    %547 = vmatprep.subr.bf16.mxu0 0
    %548 = vmatpush1.bf16.msra.mxu0 0
    %549 = vmatprep.subr.bf16.mxu0 0
    %550 = vmatpush1.bf16.msra.mxu0 0
    %551 = vmatprep.subr.bf16.mxu0 0
    %552 = vmatpush1.bf16.msra.mxu0 0
    %553 = vmatprep.subr.bf16.mxu0 0
    %554 = vmatpush1.bf16.msra.mxu0 0
    %555 = vmatprep.subr.bf16.mxu0 0
    %556 = vmatpush1.bf16.msra.mxu0 0
    %557 = vmatprep.subr.bf16.mxu0 0
    %558 = vmatpush1.bf16.msra.mxu0 0
    %559 = vmatprep.subr.bf16.mxu0 0
    %560 = vmatpush1.bf16.msra.mxu0 0
    %561 = vmatprep.subr.bf16.mxu0 0
    %562 = vmatpush1.bf16.msra.mxu0 0
    %563 = vmatprep.subr.bf16.mxu0 0
    %564 = vmatpush1.bf16.msra.mxu0 0
    %565 = vmatprep.subr.bf16.mxu0 0
    %566 = vmatpush1.bf16.msra.mxu0 0
    %567 = vmatprep.subr.bf16.mxu0 0
    %568 = vmatpush1.bf16.msra.mxu0 0
    %569 = vmatprep.subr.bf16.mxu0 0
    %570 = vmatpush1.bf16.msra.mxu0 0
    %571 = vmatprep.mubr.bf16.mxu0 0
    %572 = vmatmul.mubr.bf16.gmra.mrb[0].mxu0 %v534
    %v573 = vpop.f32.mrb[0].mxu0
    %v574 = vadd.f32 0.0, %v573
    %v575 = vpop.f32.mrb[0].mxu0
    %v576 = vpop.f32.mrb[0].mxu0
    %v577 = vpop.f32.mrb[0].mxu0
    %578 = vdwg.mxu0
    %v579 = vrcp.pop %v477
    %v580 = vrcp.pop %v480
    %v581 = vmul.f32 %v130, %v579
    %v582 = vmul.f32 %v130, %v580
    %584 = vset.pattern.permute.xlu0 0
    %585 = vperm.xlu0 %584, %v581
    %v586 = vpop.permute.xlu0 %585
    %589 = vset.pattern.permute.xlu0 0
    %590 = vperm.xlu0 %589, %v582
    %v591 = vpop.permute.xlu0 %590
    %v593 = vmul.f32 %v586, %v526
    %v594 = vmul.f32 %v591, %v574
    %597 = vrot.lane.b32.xlu0 %v593, 8
    %v598 = vpop.permute.xlu0 %597
    %599 = vrot.lane.b32.xlu0 %v594, 8
    %v600 = vpop.permute.xlu0 %599
    %vm603 = vcmask 130112
    %604 = vst.msk [vmem:[#allocation2] sm:$0xff] %vm603, %v598
    %605 = vst.msk [vmem:[#allocation2 + $0x8] sm:$0xff] %vm603, %v600
    %606 = vrot.lane.b32.xlu0 %v127, 112
    %v607 = vpop.permute.xlu0 %606
    %608 = vrot.lane.b32.xlu0 %v127, 80
    %v609 = vpop.permute.xlu0 %608
    %v611 = vsel %vm133, %v607, 0
    %v614 = vsel %vm133, %v609, 0
    %616 = vmatprep.subr.bf16.mxu0 0
    %617 = vmatpush1.bf16.xpose.msra.mxu0 %v614
    %618 = vmatprep.subr.bf16.mxu0 0
    %619 = vmatpush1.bf16.xpose.msra.mxu0 0
    %620 = vmatprep.subr.bf16.mxu0 0
    %621 = vmatpush1.bf16.xpose.msra.mxu0 0
    %622 = vmatprep.subr.bf16.mxu0 0
    %623 = vmatpush1.bf16.xpose.msra.mxu0 0
    %624 = vmatprep.subr.bf16.mxu0 0
    %625 = vmatpush1.bf16.xpose.msra.mxu0 0
    %626 = vmatprep.subr.bf16.mxu0 0
    %627 = vmatpush1.bf16.xpose.msra.mxu0 0
    %628 = vmatprep.subr.bf16.mxu0 0
    %629 = vmatpush1.bf16.xpose.msra.mxu0 0
    %630 = vmatprep.subr.bf16.mxu0 0
    %631 = vmatpush1.bf16.xpose.msra.mxu0 0
    %632 = vmatprep.subr.bf16.mxu0 0
    %633 = vmatpush1.bf16.xpose.msra.mxu0 0
    %634 = vmatprep.subr.bf16.mxu0 0
    %635 = vmatpush1.bf16.xpose.msra.mxu0 0
    %636 = vmatprep.subr.bf16.mxu0 0
    %637 = vmatpush1.bf16.xpose.msra.mxu0 0
    %638 = vmatprep.subr.bf16.mxu0 0
    %639 = vmatpush1.bf16.xpose.msra.mxu0 0
    %640 = vmatprep.subr.bf16.mxu0 0
    %641 = vmatpush1.bf16.xpose.msra.mxu0 0
    %642 = vmatprep.subr.bf16.mxu0 0
    %643 = vmatpush1.bf16.xpose.msra.mxu0 0
    %644 = vmatprep.subr.bf16.mxu0 0
    %645 = vmatpush1.bf16.xpose.msra.mxu0 0
    %646 = vmatprep.subr.bf16.mxu0 0
    %647 = vmatpush1.bf16.xpose.msra.mxu0 0
    %648 = vmatprep.mubr.bf16.mxu0 0
    %649 = vmatmul.mubr.bf16.gmra.mrb[0].mxu0 %v611
    %v650 = vpop.f32.mrb[0].mxu0
    %v651 = vadd.f32 %v129, %v650
    %v652 = vpop.f32.mrb[0].mxu0
    %v653 = vpop.f32.mrb[0].mxu0
    %v654 = vpop.f32.mrb[0].mxu0
    %655 = vdwg.mxu0
    %656 = vrot.lane.b32.xlu0 %v128, 112
    %v657 = vpop.permute.xlu0 %656
    %658 = vrot.lane.b32.xlu0 %v128, 80
    %v659 = vpop.permute.xlu0 %658
    %v661 = vsel %vm133, %v657, 0
    %v664 = vsel %vm133, %v659, 0
    %666 = vmatprep.subr.bf16.mxu0 0
    %667 = vmatpush1.bf16.xpose.msra.mxu0 %v664
    %668 = vmatprep.subr.bf16.mxu0 0
    %669 = vmatpush1.bf16.xpose.msra.mxu0 0
    %670 = vmatprep.subr.bf16.mxu0 0
    %671 = vmatpush1.bf16.xpose.msra.mxu0 0
    %672 = vmatprep.subr.bf16.mxu0 0
    %673 = vmatpush1.bf16.xpose.msra.mxu0 0
    %674 = vmatprep.subr.bf16.mxu0 0
    %675 = vmatpush1.bf16.xpose.msra.mxu0 0
    %676 = vmatprep.subr.bf16.mxu0 0
    %677 = vmatpush1.bf16.xpose.msra.mxu0 0
    %678 = vmatprep.subr.bf16.mxu0 0
    %679 = vmatpush1.bf16.xpose.msra.mxu0 0
    %680 = vmatprep.subr.bf16.mxu0 0
    %681 = vmatpush1.bf16.xpose.msra.mxu0 0
    %682 = vmatprep.subr.bf16.mxu0 0
    %683 = vmatpush1.bf16.xpose.msra.mxu0 0
    %684 = vmatprep.subr.bf16.mxu0 0
    %685 = vmatpush1.bf16.xpose.msra.mxu0 0
    %686 = vmatprep.subr.bf16.mxu0 0
    %687 = vmatpush1.bf16.xpose.msra.mxu0 0
    %688 = vmatprep.subr.bf16.mxu0 0
    %689 = vmatpush1.bf16.xpose.msra.mxu0 0
    %690 = vmatprep.subr.bf16.mxu0 0
    %691 = vmatpush1.bf16.xpose.msra.mxu0 0
    %692 = vmatprep.subr.bf16.mxu0 0
    %693 = vmatpush1.bf16.xpose.msra.mxu0 0
    %694 = vmatprep.subr.bf16.mxu0 0
    %695 = vmatpush1.bf16.xpose.msra.mxu0 0
    %696 = vmatprep.subr.bf16.mxu0 0
    %697 = vmatpush1.bf16.xpose.msra.mxu0 0
    %698 = vmatprep.mubr.bf16.mxu0 0
    %699 = vmatmul.mubr.bf16.gmra.mrb[0].mxu0 %v661
    %v700 = vpop.f32.mrb[0].mxu0
    %v701 = vadd.f32 %v129, %v700
    %v702 = vpop.f32.mrb[0].mxu0
    %v703 = vpop.f32.mrb[0].mxu0
    %v704 = vpop.f32.mrb[0].mxu0
    %705 = vdwg.mxu0
    %v706 = vsel %vm133, %v651, -inf
    %707 = vmax.xlane.f32.xlu0 %v706
    %v708 = vpop.xlane.xlu0 %707
    %v709 = vsel %vm133, %v701, -inf
    %710 = vmax.xlane.f32.xlu0 %v709
    %v711 = vpop.xlane.xlu0 %710
    %v712 = vsub.f32 %v651, %v708
    %v713 = vsub.f32 %v701, %v711
    %v714 = vmul.f32 %v712, 1.442695
    %v715 = vpow.pop %v714
    %v716 = vmul.f32 %v713, 1.442695
    %v717 = vpow.pop %v716
    %v718 = vsel %vm133, %v715, 0.0
    %719 = vadd.xlane.f32.xlu0 %v718
    %v720 = vpop.xlane.xlu0 %719
    %v721 = vsel %vm133, %v717, 0.0
    %722 = vadd.xlane.f32.xlu0 %v721
    %v723 = vpop.xlane.xlu0 %722
    %v724 = vpack.c.bf16 %v715, %v715
    %v725 = vpack.c.bf16 %v717, %v717
    %726 = vrot.lane.b32.xlu0 %v127, 48
    %v727 = vpop.permute.xlu0 %726
    %v729 = vsel %vm133, %v724, 0
    %v732 = vsel %vm253, %v727, 0
    %734 = vmatprep.subr.bf16.mxu0 0
    %735 = vmatpush1.bf16.msra.mxu0 %v732
    %736 = vmatprep.subr.bf16.mxu0 0
    %737 = vmatpush1.bf16.msra.mxu0 0
    %738 = vmatprep.subr.bf16.mxu0 0
    %739 = vmatpush1.bf16.msra.mxu0 0
    %740 = vmatprep.subr.bf16.mxu0 0
    %741 = vmatpush1.bf16.msra.mxu0 0
    %742 = vmatprep.subr.bf16.mxu0 0
    %743 = vmatpush1.bf16.msra.mxu0 0
    %744 = vmatprep.subr.bf16.mxu0 0
    %745 = vmatpush1.bf16.msra.mxu0 0
    %746 = vmatprep.subr.bf16.mxu0 0
    %747 = vmatpush1.bf16.msra.mxu0 0
    %748 = vmatprep.subr.bf16.mxu0 0
    %749 = vmatpush1.bf16.msra.mxu0 0
    %750 = vmatprep.subr.bf16.mxu0 0
    %751 = vmatpush1.bf16.msra.mxu0 0
    %752 = vmatprep.subr.bf16.mxu0 0
    %753 = vmatpush1.bf16.msra.mxu0 0
    %754 = vmatprep.subr.bf16.mxu0 0
    %755 = vmatpush1.bf16.msra.mxu0 0
    %756 = vmatprep.subr.bf16.mxu0 0
    %757 = vmatpush1.bf16.msra.mxu0 0
    %758 = vmatprep.subr.bf16.mxu0 0
    %759 = vmatpush1.bf16.msra.mxu0 0
    %760 = vmatprep.subr.bf16.mxu0 0
    %761 = vmatpush1.bf16.msra.mxu0 0
    %762 = vmatprep.subr.bf16.mxu0 0
    %763 = vmatpush1.bf16.msra.mxu0 0
    %764 = vmatprep.subr.bf16.mxu0 0
    %765 = vmatpush1.bf16.msra.mxu0 0
    %766 = vmatprep.mubr.bf16.mxu0 0
    %767 = vmatmul.mubr.bf16.gmra.mrb[0].mxu0 %v729
    %v768 = vpop.f32.mrb[0].mxu0
    %v769 = vadd.f32 0.0, %v768
    %v770 = vpop.f32.mrb[0].mxu0
    %v771 = vpop.f32.mrb[0].mxu0
    %v772 = vpop.f32.mrb[0].mxu0
    %773 = vdwg.mxu0
    %774 = vrot.lane.b32.xlu0 %v128, 48
    %v775 = vpop.permute.xlu0 %774
    %v777 = vsel %vm133, %v725, 0
    %v780 = vsel %vm253, %v775, 0
    %782 = vmatprep.subr.bf16.mxu0 0
    %783 = vmatpush1.bf16.msra.mxu0 %v780
    %784 = vmatprep.subr.bf16.mxu0 0
    %785 = vmatpush1.bf16.msra.mxu0 0
    %786 = vmatprep.subr.bf16.mxu0 0
    %787 = vmatpush1.bf16.msra.mxu0 0
    %788 = vmatprep.subr.bf16.mxu0 0
    %789 = vmatpush1.bf16.msra.mxu0 0
    %790 = vmatprep.subr.bf16.mxu0 0
    %791 = vmatpush1.bf16.msra.mxu0 0
    %792 = vmatprep.subr.bf16.mxu0 0
    %793 = vmatpush1.bf16.msra.mxu0 0
    %794 = vmatprep.subr.bf16.mxu0 0
    %795 = vmatpush1.bf16.msra.mxu0 0
    %796 = vmatprep.subr.bf16.mxu0 0
    %797 = vmatpush1.bf16.msra.mxu0 0
    %798 = vmatprep.subr.bf16.mxu0 0
    %799 = vmatpush1.bf16.msra.mxu0 0
    %800 = vmatprep.subr.bf16.mxu0 0
    %801 = vmatpush1.bf16.msra.mxu0 0
    %802 = vmatprep.subr.bf16.mxu0 0
    %803 = vmatpush1.bf16.msra.mxu0 0
    %804 = vmatprep.subr.bf16.mxu0 0
    %805 = vmatpush1.bf16.msra.mxu0 0
    %806 = vmatprep.subr.bf16.mxu0 0
    %807 = vmatpush1.bf16.msra.mxu0 0
    %808 = vmatprep.subr.bf16.mxu0 0
    %809 = vmatpush1.bf16.msra.mxu0 0
    %810 = vmatprep.subr.bf16.mxu0 0
    %811 = vmatpush1.bf16.msra.mxu0 0
    %812 = vmatprep.subr.bf16.mxu0 0
    %813 = vmatpush1.bf16.msra.mxu0 0
    %814 = vmatprep.mubr.bf16.mxu0 0
    %815 = vmatmul.mubr.bf16.gmra.mrb[0].mxu0 %v777
    %v816 = vpop.f32.mrb[0].mxu0
    %v817 = vadd.f32 0.0, %v816
    %v818 = vpop.f32.mrb[0].mxu0
    %v819 = vpop.f32.mrb[0].mxu0
    %v820 = vpop.f32.mrb[0].mxu0
    %821 = vdwg.mxu0
    %v822 = vrcp.pop %v720
    %v823 = vrcp.pop %v723
    %v824 = vmul.f32 %v130, %v822
    %v825 = vmul.f32 %v130, %v823
    %827 = vset.pattern.permute.xlu0 0
    %828 = vperm.xlu0 %827, %v824
    %v829 = vpop.permute.xlu0 %828
    %832 = vset.pattern.permute.xlu0 0
    %833 = vperm.xlu0 %832, %v825
    %v834 = vpop.permute.xlu0 %833
    %v836 = vmul.f32 %v829, %v769
    %v837 = vmul.f32 %v834, %v817
    %840 = vrot.lane.b32.xlu0 %v836, 16
    %v841 = vpop.permute.xlu0 %840
    %842 = vrot.lane.b32.xlu0 %v837, 16
    %v843 = vpop.permute.xlu0 %842
    %vm846 = vcmask 195712
    %847 = vst.msk [vmem:[#allocation2] sm:$0xff] %vm846, %v841
    %848 = vst.msk [vmem:[#allocation2 + $0x8] sm:$0xff] %vm846, %v843
    %849 = vrot.lane.b32.xlu0 %v127, 104
    %v850 = vpop.permute.xlu0 %849
    %851 = vrot.lane.b32.xlu0 %v127, 72
    %v852 = vpop.permute.xlu0 %851
    %v854 = vsel %vm133, %v850, 0
    %v857 = vsel %vm133, %v852, 0
    %859 = vmatprep.subr.bf16.mxu0 0
    %860 = vmatpush1.bf16.xpose.msra.mxu0 %v857
    %861 = vmatprep.subr.bf16.mxu0 0
    %862 = vmatpush1.bf16.xpose.msra.mxu0 0
    %863 = vmatprep.subr.bf16.mxu0 0
    %864 = vmatpush1.bf16.xpose.msra.mxu0 0
    %865 = vmatprep.subr.bf16.mxu0 0
    %866 = vmatpush1.bf16.xpose.msra.mxu0 0
    %867 = vmatprep.subr.bf16.mxu0 0
    %868 = vmatpush1.bf16.xpose.msra.mxu0 0
    %869 = vmatprep.subr.bf16.mxu0 0
    %870 = vmatpush1.bf16.xpose.msra.mxu0 0
    %871 = vmatprep.subr.bf16.mxu0 0
    %872 = vmatpush1.bf16.xpose.msra.mxu0 0
    %873 = vmatprep.subr.bf16.mxu0 0
    %874 = vmatpush1.bf16.xpose.msra.mxu0 0
    %875 = vmatprep.subr.bf16.mxu0 0
    %876 = vmatpush1.bf16.xpose.msra.mxu0 0
    %877 = vmatprep.subr.bf16.mxu0 0
    %878 = vmatpush1.bf16.xpose.msra.mxu0 0
    %879 = vmatprep.subr.bf16.mxu0 0
    %880 = vmatpush1.bf16.xpose.msra.mxu0 0
    %881 = vmatprep.subr.bf16.mxu0 0
    %882 = vmatpush1.bf16.xpose.msra.mxu0 0
    %883 = vmatprep.subr.bf16.mxu0 0
    %884 = vmatpush1.bf16.xpose.msra.mxu0 0
    %885 = vmatprep.subr.bf16.mxu0 0
    %886 = vmatpush1.bf16.xpose.msra.mxu0 0
    %887 = vmatprep.subr.bf16.mxu0 0
    %888 = vmatpush1.bf16.xpose.msra.mxu0 0
    %889 = vmatprep.subr.bf16.mxu0 0
    %890 = vmatpush1.bf16.xpose.msra.mxu0 0
    %891 = vmatprep.mubr.bf16.mxu0 0
    %892 = vmatmul.mubr.bf16.gmra.mrb[0].mxu0 %v854
    %v893 = vpop.f32.mrb[0].mxu0
    %v894 = vadd.f32 %v129, %v893
    %v895 = vpop.f32.mrb[0].mxu0
    %v896 = vpop.f32.mrb[0].mxu0
    %v897 = vpop.f32.mrb[0].mxu0
    %898 = vdwg.mxu0
    %899 = vrot.lane.b32.xlu0 %v128, 104
    %v900 = vpop.permute.xlu0 %899
    %901 = vrot.lane.b32.xlu0 %v128, 72
    %v902 = vpop.permute.xlu0 %901
    %v904 = vsel %vm133, %v900, 0
    %v907 = vsel %vm133, %v902, 0
    %909 = vmatprep.subr.bf16.mxu0 0
    %910 = vmatpush1.bf16.xpose.msra.mxu0 %v907
    %911 = vmatprep.subr.bf16.mxu0 0
    %912 = vmatpush1.bf16.xpose.msra.mxu0 0
    %913 = vmatprep.subr.bf16.mxu0 0
    %914 = vmatpush1.bf16.xpose.msra.mxu0 0
    %915 = vmatprep.subr.bf16.mxu0 0
    %916 = vmatpush1.bf16.xpose.msra.mxu0 0
    %917 = vmatprep.subr.bf16.mxu0 0
    %918 = vmatpush1.bf16.xpose.msra.mxu0 0
    %919 = vmatprep.subr.bf16.mxu0 0
    %920 = vmatpush1.bf16.xpose.msra.mxu0 0
    %921 = vmatprep.subr.bf16.mxu0 0
    %922 = vmatpush1.bf16.xpose.msra.mxu0 0
    %923 = vmatprep.subr.bf16.mxu0 0
    %924 = vmatpush1.bf16.xpose.msra.mxu0 0
    %925 = vmatprep.subr.bf16.mxu0 0
    %926 = vmatpush1.bf16.xpose.msra.mxu0 0
    %927 = vmatprep.subr.bf16.mxu0 0
    %928 = vmatpush1.bf16.xpose.msra.mxu0 0
    %929 = vmatprep.subr.bf16.mxu0 0
    %930 = vmatpush1.bf16.xpose.msra.mxu0 0
    %931 = vmatprep.subr.bf16.mxu0 0
    %932 = vmatpush1.bf16.xpose.msra.mxu0 0
    %933 = vmatprep.subr.bf16.mxu0 0
    %934 = vmatpush1.bf16.xpose.msra.mxu0 0
    %935 = vmatprep.subr.bf16.mxu0 0
    %936 = vmatpush1.bf16.xpose.msra.mxu0 0
    %937 = vmatprep.subr.bf16.mxu0 0
    %938 = vmatpush1.bf16.xpose.msra.mxu0 0
    %939 = vmatprep.subr.bf16.mxu0 0
    %940 = vmatpush1.bf16.xpose.msra.mxu0 0
    %941 = vmatprep.mubr.bf16.mxu0 0
    %942 = vmatmul.mubr.bf16.gmra.mrb[0].mxu0 %v904
    %v943 = vpop.f32.mrb[0].mxu0
    %v944 = vadd.f32 %v129, %v943
    %v945 = vpop.f32.mrb[0].mxu0
    %v946 = vpop.f32.mrb[0].mxu0
    %v947 = vpop.f32.mrb[0].mxu0
    %948 = vdwg.mxu0
    %v949 = vsel %vm133, %v894, -inf
    %950 = vmax.xlane.f32.xlu0 %v949
    %v951 = vpop.xlane.xlu0 %950
    %v952 = vsel %vm133, %v944, -inf
    %953 = vmax.xlane.f32.xlu0 %v952
    %v954 = vpop.xlane.xlu0 %953
    %v955 = vsub.f32 %v894, %v951
    %v956 = vsub.f32 %v944, %v954
    %v957 = vmul.f32 %v955, 1.442695
    %v958 = vpow.pop %v957
    %v959 = vmul.f32 %v956, 1.442695
    %v960 = vpow.pop %v959
    %v961 = vsel %vm133, %v958, 0.0
    %962 = vadd.xlane.f32.xlu0 %v961
    %v963 = vpop.xlane.xlu0 %962
    %v964 = vsel %vm133, %v960, 0.0
    %965 = vadd.xlane.f32.xlu0 %v964
    %v966 = vpop.xlane.xlu0 %965
    %v967 = vpack.c.bf16 %v958, %v958
    %v968 = vpack.c.bf16 %v960, %v960
    %969 = vrot.lane.b32.xlu0 %v127, 40
    %v970 = vpop.permute.xlu0 %969
    %v972 = vsel %vm133, %v967, 0
    %v975 = vsel %vm253, %v970, 0
    %977 = vmatprep.subr.bf16.mxu0 0
    %978 = vmatpush1.bf16.msra.mxu0 %v975
    %979 = vmatprep.subr.bf16.mxu0 0
    %980 = vmatpush1.bf16.msra.mxu0 0
    %981 = vmatprep.subr.bf16.mxu0 0
    %982 = vmatpush1.bf16.msra.mxu0 0
    %983 = vmatprep.subr.bf16.mxu0 0
    %984 = vmatpush1.bf16.msra.mxu0 0
    %985 = vmatprep.subr.bf16.mxu0 0
    %986 = vmatpush1.bf16.msra.mxu0 0
    %987 = vmatprep.subr.bf16.mxu0 0
    %988 = vmatpush1.bf16.msra.mxu0 0
    %989 = vmatprep.subr.bf16.mxu0 0
    %990 = vmatpush1.bf16.msra.mxu0 0
    %991 = vmatprep.subr.bf16.mxu0 0
    %992 = vmatpush1.bf16.msra.mxu0 0
    %993 = vmatprep.subr.bf16.mxu0 0
    %994 = vmatpush1.bf16.msra.mxu0 0
    %995 = vmatprep.subr.bf16.mxu0 0
    %996 = vmatpush1.bf16.msra.mxu0 0
    %997 = vmatprep.subr.bf16.mxu0 0
    %998 = vmatpush1.bf16.msra.mxu0 0
    %999 = vmatprep.subr.bf16.mxu0 0
    %1000 = vmatpush1.bf16.msra.mxu0 0
    %1001 = vmatprep.subr.bf16.mxu0 0
    %1002 = vmatpush1.bf16.msra.mxu0 0
    %1003 = vmatprep.subr.bf16.mxu0 0
    %1004 = vmatpush1.bf16.msra.mxu0 0
    %1005 = vmatprep.subr.bf16.mxu0 0
    %1006 = vmatpush1.bf16.msra.mxu0 0
    %1007 = vmatprep.subr.bf16.mxu0 0
    %1008 = vmatpush1.bf16.msra.mxu0 0
    %1009 = vmatprep.mubr.bf16.mxu0 0
    %1010 = vmatmul.mubr.bf16.gmra.mrb[0].mxu0 %v972
    %v1011 = vpop.f32.mrb[0].mxu0
    %v1012 = vadd.f32 0.0, %v1011
    %v1013 = vpop.f32.mrb[0].mxu0
    %v1014 = vpop.f32.mrb[0].mxu0
    %v1015 = vpop.f32.mrb[0].mxu0
    %1016 = vdwg.mxu0
    %1017 = vrot.lane.b32.xlu0 %v128, 40
    %v1018 = vpop.permute.xlu0 %1017
    %v1020 = vsel %vm133, %v968, 0
    %v1023 = vsel %vm253, %v1018, 0
    %1025 = vmatprep.subr.bf16.mxu0 0
    %1026 = vmatpush1.bf16.msra.mxu0 %v1023
    %1027 = vmatprep.subr.bf16.mxu0 0
    %1028 = vmatpush1.bf16.msra.mxu0 0
    %1029 = vmatprep.subr.bf16.mxu0 0
    %1030 = vmatpush1.bf16.msra.mxu0 0
    %1031 = vmatprep.subr.bf16.mxu0 0
    %1032 = vmatpush1.bf16.msra.mxu0 0
    %1033 = vmatprep.subr.bf16.mxu0 0
    %1034 = vmatpush1.bf16.msra.mxu0 0
    %1035 = vmatprep.subr.bf16.mxu0 0
    %1036 = vmatpush1.bf16.msra.mxu0 0
    %1037 = vmatprep.subr.bf16.mxu0 0
    %1038 = vmatpush1.bf16.msra.mxu0 0
    %1039 = vmatprep.subr.bf16.mxu0 0
    %1040 = vmatpush1.bf16.msra.mxu0 0
    %1041 = vmatprep.subr.bf16.mxu0 0
    %1042 = vmatpush1.bf16.msra.mxu0 0
    %1043 = vmatprep.subr.bf16.mxu0 0
    %1044 = vmatpush1.bf16.msra.mxu0 0
    %1045 = vmatprep.subr.bf16.mxu0 0
    %1046 = vmatpush1.bf16.msra.mxu0 0
    %1047 = vmatprep.subr.bf16.mxu0 0
    %1048 = vmatpush1.bf16.msra.mxu0 0
    %1049 = vmatprep.subr.bf16.mxu0 0
    %1050 = vmatpush1.bf16.msra.mxu0 0
    %1051 = vmatprep.subr.bf16.mxu0 0
    %1052 = vmatpush1.bf16.msra.mxu0 0
    %1053 = vmatprep.subr.bf16.mxu0 0
    %1054 = vmatpush1.bf16.msra.mxu0 0
    %1055 = vmatprep.subr.bf16.mxu0 0
    %1056 = vmatpush1.bf16.msra.mxu0 0
    %1057 = vmatprep.mubr.bf16.mxu0 0
    %1058 = vmatmul.mubr.bf16.gmra.mrb[0].mxu0 %v1020
    %v1059 = vpop.f32.mrb[0].mxu0
    %v1060 = vadd.f32 0.0, %v1059
    %v1061 = vpop.f32.mrb[0].mxu0
    %v1062 = vpop.f32.mrb[0].mxu0
    %v1063 = vpop.f32.mrb[0].mxu0
    %1064 = vdwg.mxu0
    %v1065 = vrcp.pop %v963
    %v1066 = vrcp.pop %v966
    %v1067 = vmul.f32 %v130, %v1065
    %v1068 = vmul.f32 %v130, %v1066
    %1070 = vset.pattern.permute.xlu0 0
    %1071 = vperm.xlu0 %1070, %v1067
    %v1072 = vpop.permute.xlu0 %1071
    %1075 = vset.pattern.permute.xlu0 0
    %1076 = vperm.xlu0 %1075, %v1068
    %v1077 = vpop.permute.xlu0 %1076
    %v1079 = vmul.f32 %v1072, %v1012
    %v1080 = vmul.f32 %v1077, %v1060
    %1083 = vrot.lane.b32.xlu0 %v1079, 24
    %v1084 = vpop.permute.xlu0 %1083
    %1085 = vrot.lane.b32.xlu0 %v1080, 24
    %v1086 = vpop.permute.xlu0 %1085
    %vm1089 = vcmask 261312
    %1090 = vst.msk [vmem:[#allocation2] sm:$0xff] %vm1089, %v1084
    %1091 = vst.msk [vmem:[#allocation2 + $0x8] sm:$0xff] %vm1089, %v1086
    %v1092 = vld [vmem:[#allocation2] sm:$0xff]
    %v1093 = vld [vmem:[#allocation2 + $0x8] sm:$0xff]
    %1094 = vst.msk [vmem:[#allocation8] sm:$0xff] %vm78, %v1092
    %1095 = vst.msk [vmem:[#allocation8 + $0x8] sm:$0xff] %vm78, %v1093
    // Predicated region
    $region30: #{tpu_custom_call.1} parent=1 // pred_check
      _
    $region31: #{tpu_custom_call.1} parent=1 // pred_check_branch
      %1097 = sbr.rel (0) target = $region33
    $region32: #{tpu_custom_call.1} parent=1 // pred_region
      %s1099 = ssub.s32 256, 256
      %1100 = vsyncadd [#allocation5], %s1099
      %s1101 = sshll.u32 [#allocation8], 4
      %s1102 = int_to_ptr.vmem [resolvable:$true] %s1101
      %1107 = dma.vmem_to_hbm [thread:$0]  %s1102, 256, %s5, [#allocation5], 128, 128, 8
    $region33: #{tpu_custom_call.1} parent=1 // pred_fallthru
      _
    // Predicated region
    $region34: #{tpu_custom_call.1} parent=1 // pred_check
      _
    $region35: #{tpu_custom_call.1} parent=1 // pred_check_branch
      %1109 = sbr.rel (0) target = $region37
    $region36: #{tpu_custom_call.1} parent=1 // pred_region
      %1110 = dma.done [#allocation5], 256
    $region37: #{tpu_custom_call.1} parent=1 // pred_fallthru
      _
    %1111 = vsyncpa [#allocation4], 1
    %1112 = vsyncpa [#allocation7], 1
    %1113 = vsyncpa [#allocation5], 1

</llo_original>
